<compile_context>
chip_gen: v7x
topology: tpu7x:2x2x1
jax: 0.10.0
libtpu: 0.0.40
codegen_flags: <defaults>
</compile_context>

<pallas_src>
import functools

import jax
import jax.numpy as jnp
from jax.experimental import pallas as pl
from jax.experimental.pallas import tpu as pltpu


def ngram_kernel(ids_ref, emb_ref, w1_ref, b1_ref, w2_ref, b2_ref, out_ref):
    # ids_ref: (TB, C)      int32
    # emb_ref: (Vpad_e, E)  bf16  (rows >= vocab are zero and never selected)
    # w1_ref : (C, E, H)    bf16  (linear1 weight, pre-transposed, split per context slot)
    # b1_ref : (1, H)       f32
    # w2_ref : (H, Vpad)    bf16  (padded vocab columns are zero)
    # b2_ref : (1, Vpad)    f32   (padded vocab lanes are -1e30 -> masked out of max/LSE)
    # out_ref: (TB, Vpad)   f32
    tb, ctx = ids_ref.shape
    vpad_e, _ = emb_ref.shape
    hidden = b1_ref.shape[1]

    ids = ids_ref[...]
    emb = emb_ref[...]

    # Hidden accumulator initialized with the bias (bias folded into acc init).
    h = jnp.broadcast_to(b1_ref[...], (tb, hidden)).astype(jnp.float32)

    # Fused embedding gather + linear1: for each context slot, one-hot(ids) @ emb
    # picks the embedding rows on the MXU, then @ W1[c] accumulates into h.
    # C is tiny, so this static Python unroll is fine.
    for c in range(ctx):
        onehot = (ids[:, c:c + 1] ==
                  jax.lax.broadcasted_iota(jnp.int32, (tb, vpad_e), 1)
                  ).astype(jnp.bfloat16)                                   # (TB, Vpad_e)
        xc = jnp.dot(onehot, emb, preferred_element_type=jnp.float32)      # (TB, E)
        h = h + jnp.dot(xc.astype(jnp.bfloat16), w1_ref[c],
                        preferred_element_type=jnp.float32)                # (TB, H)

    h = jnp.maximum(h, 0.0)                                                # F.relu

    logits = jnp.dot(h.astype(jnp.bfloat16), w2_ref[...],
                     preferred_element_type=jnp.float32) + b2_ref[...]     # (TB, Vpad)

    # Stable log_softmax over the lane-dense (padded) vocab axis.  Padded lanes
    # carry -1e30 from b2, so they never win the max and exp() underflows to 0.
    m = jnp.max(logits, axis=-1, keepdims=True)
    s = logits - m
    lse = jnp.log(jnp.sum(jnp.exp(s), axis=-1, keepdims=True))
    out_ref[...] = s - lse


@functools.partial(jax.jit, static_argnames=("tile_b",))
def ngram_forward_batched(ids, emb, w1, b1, w2, b2, *, tile_b=128):
    """log_softmax(relu(embed(ids).reshape(B,-1) @ w1 + b1) @ w2 + b2) for B contexts.

    ids: (B, C) int32; emb: (V, E); w1: (C*E, H); b1: (H,); w2: (H, V); b2: (V,).
    Returns (B, V) float32 log-probabilities.
    """
    batch, ctx = ids.shape
    vocab, edim = emb.shape
    hidden = w1.shape[1]
    assert w1.shape[0] == ctx * edim

    lane = 128
    vpad = -(-vocab // lane) * lane            # lane-dense logits / one-hot
    bpad = -(-batch // tile_b) * tile_b
    neg = jnp.float32(-1e30)

    ids_p = jnp.zeros((bpad, ctx), jnp.int32).at[:batch].set(ids.astype(jnp.int32))
    emb_p = jnp.zeros((vpad, edim), jnp.bfloat16).at[:vocab].set(emb.astype(jnp.bfloat16))
    w1_p = w1.reshape(ctx, edim, hidden).astype(jnp.bfloat16)
    b1_p = b1.reshape(1, hidden).astype(jnp.float32)
    w2_p = jnp.zeros((hidden, vpad), jnp.bfloat16).at[:, :vocab].set(w2.astype(jnp.bfloat16))
    b2_p = jnp.full((1, vpad), neg, jnp.float32).at[0, :vocab].set(
        b2.reshape(-1).astype(jnp.float32))

    grid = (bpad // tile_b,)
    out = pl.pallas_call(
        ngram_kernel,
        out_shape=jax.ShapeDtypeStruct((bpad, vpad), jnp.float32),
        grid_spec=pltpu.PrefetchScalarGridSpec(
            num_scalar_prefetch=0,
            grid=grid,
            in_specs=[
                pl.BlockSpec((tile_b, ctx), lambda i: (i, 0)),          # ids tile
                pl.BlockSpec((vpad, edim), lambda i: (0, 0)),           # embedding table
                pl.BlockSpec((ctx, edim, hidden), lambda i: (0, 0, 0)), # W1
                pl.BlockSpec((1, hidden), lambda i: (0, 0)),            # b1
                pl.BlockSpec((hidden, vpad), lambda i: (0, 0)),         # W2 (vocab-padded)
                pl.BlockSpec((1, vpad), lambda i: (0, 0)),              # b2 (-1e30 padded)
            ],
            out_specs=pl.BlockSpec((tile_b, vpad), lambda i: (i, 0)),
        ),
        compiler_params=pltpu.CompilerParams(
            dimension_semantics=("parallel",),
        ),
    )(ids_p, emb_p, w1_p, b1_p, w2_p, b2_p)
    # TODO(synk): for realistic vocab sizes (>=10k) add a second ("arbitrary") grid
    # axis tiling w2/b2/logits over vocab with an online max/LSE VMEM accumulator,
    # so double-buffered W2 tiles fit v7x's 32 MiB scoped VMEM.
    return out[:batch, :vocab]


def ngram_forward(inputs, emb, w1, b1, w2, b2, *, tile_b=128):
    """Original module semantics: single context (C,) int ids -> (1, V) log-probs."""
    return ngram_forward_batched(inputs[None, :], emb, w1, b1, w2, b2, tile_b=tile_b)


def ngram_reference_f32(ids, emb, w1, b1, w2, b2):
    hi = jax.lax.Precision.HIGHEST
    x = jnp.take(emb, ids, axis=0).reshape(ids.shape[0], -1)
    h = jnp.maximum(jnp.dot(x, w1, precision=hi) + b1[None, :], 0.0)
    logits = jnp.dot(h, w2, precision=hi) + b2[None, :]
    return jax.nn.log_softmax(logits, axis=1)


def ngram_reference_bf16(ids, emb, w1, b1, w2, b2):
    # Mirrors the kernel's precision: bf16 MXU inputs, f32 accumulation, f32 epilogue.
    hi = jax.lax.Precision.HIGHEST
    f32 = jnp.float32
    emb_b = emb.astype(jnp.bfloat16).astype(f32)
    w1_b = w1.astype(jnp.bfloat16).astype(f32)
    w2_b = w2.astype(jnp.bfloat16).astype(f32)
    x = jnp.take(emb_b, ids, axis=0).reshape(ids.shape[0], -1)
    h = jnp.maximum(jnp.dot(x, w1_b, precision=hi) + b1[None, :].astype(f32), 0.0)
    h = h.astype(jnp.bfloat16).astype(f32)
    logits = jnp.dot(h, w2_b, precision=hi) + b2[None, :].astype(f32)
    return jax.nn.log_softmax(logits, axis=1)


if __name__ == "__main__":
    VOCAB_SIZE = 32
    EMBEDDING_DIM = 10
    CONTEXT_SIZE = 2
    HIDDEN = 128          # fixed by the module definition
    BATCH = 256           # contexts processed per kernel call
    TILE_B = 128          # use 256 on v6e/v7x to fill the 2x256x256 MXU

    key = jax.random.PRNGKey(0)
    k_emb, k_w1, k_b1, k_w2, k_b2, k_in = jax.random.split(key, 6)

    emb = jax.random.normal(k_emb, (VOCAB_SIZE, EMBEDDING_DIM), dtype=jnp.float32)
    fan1 = CONTEXT_SIZE * EMBEDDING_DIM
    # Linear weights stored pre-transposed relative to torch.nn.Linear ((out,in) -> (in,out)).
    w1 = jax.random.uniform(k_w1, (fan1, HIDDEN), jnp.float32, -1.0, 1.0) / jnp.sqrt(fan1)
    b1 = jax.random.uniform(k_b1, (HIDDEN,), jnp.float32, -1.0, 1.0) / jnp.sqrt(fan1)
    w2 = jax.random.uniform(k_w2, (HIDDEN, VOCAB_SIZE), jnp.float32, -1.0, 1.0) / jnp.sqrt(HIDDEN)
    b2 = jax.random.uniform(k_b2, (VOCAB_SIZE,), jnp.float32, -1.0, 1.0) / jnp.sqrt(HIDDEN)

    ids = jax.random.randint(k_in, (BATCH, CONTEXT_SIZE), 0, VOCAB_SIZE, dtype=jnp.int32)

    # Batched kernel call.
    log_probs = ngram_forward_batched(ids, emb, w1, b1, w2, b2, tile_b=TILE_B)
    jax.block_until_ready(log_probs)
    assert log_probs.shape == (BATCH, VOCAB_SIZE)

    # Rows are valid log-probabilities.
    assert jnp.allclose(jnp.sum(jnp.exp(log_probs), axis=1), 1.0, atol=1e-3)

    # Matches a reference that emulates the kernel's bf16-input / f32-accum math.
    ref_b = ngram_reference_bf16(ids, emb, w1, b1, w2, b2)
    assert jnp.allclose(log_probs, ref_b, atol=5e-3, rtol=1e-3)

    # Close to the pure-f32 reference (bf16 weight quantization tolerance).
    ref_f = ngram_reference_f32(ids, emb, w1, b1, w2, b2)
    assert jnp.allclose(log_probs, ref_f, atol=0.1, rtol=0.1)

    # Original module semantics: single context -> (1, vocab).
    single = ngram_forward(ids[0], emb, w1, b1, w2, b2, tile_b=TILE_B)
    jax.block_until_ready(single)
    assert single.shape == (1, VOCAB_SIZE)
    assert jnp.allclose(single, ref_b[:1], atol=5e-3, rtol=1e-3)

    print("KERNEL_OK")
</pallas_src>

<mosaic_0001>
module attributes {stable_mosaic.version = 11 : i64} {
  func.func @ngram_kernel(%arg0: i32, %arg1: memref<128x2xi32, #tpu.memory_space<vmem>>, %arg2: memref<128x10xbf16, #tpu.memory_space<vmem>>, %arg3: memref<2x10x128xbf16, #tpu.memory_space<vmem>>, %arg4: memref<1x128xf32, #tpu.memory_space<vmem>>, %arg5: memref<128x128xbf16, #tpu.memory_space<vmem>>, %arg6: memref<1x128xf32, #tpu.memory_space<vmem>>, %arg7: memref<128x128xf32, #tpu.memory_space<vmem>>) attributes {dimension_semantics = [#tpu.dimension_semantics<parallel>], iteration_bounds = array<i64: 2>, scalar_prefetch = 0 : i64, scratch_operands = 0 : i64, tpu.core_type = #tpu.core_type<tc>, window_params = [{transform_indices = @transform_0, window_bounds = array<i64: 128, 2>}, {pipeline_mode = #tpu.pipeline_mode<synchronous>, transform_indices = @transform_1, window_bounds = array<i64: 128, 10>}, {pipeline_mode = #tpu.pipeline_mode<synchronous>, transform_indices = @transform_2, window_bounds = array<i64: 2, 10, 128>}, {pipeline_mode = #tpu.pipeline_mode<synchronous>, transform_indices = @transform_3, window_bounds = array<i64: 1, 128>}, {pipeline_mode = #tpu.pipeline_mode<synchronous>, transform_indices = @transform_4, window_bounds = array<i64: 128, 128>}, {pipeline_mode = #tpu.pipeline_mode<synchronous>, transform_indices = @transform_5, window_bounds = array<i64: 1, 128>}, {transform_indices = @transform_6, window_bounds = array<i64: 128, 128>}]} {
    %c0 = arith.constant 0 : index
    %c0_0 = arith.constant 0 : index
    %0 = vector.load %arg1[%c0, %c0_0] : memref<128x2xi32, #tpu.memory_space<vmem>>, vector<128x2xi32>
    %c0_1 = arith.constant 0 : index
    %c0_2 = arith.constant 0 : index
    %1 = vector.load %arg2[%c0_1, %c0_2] : memref<128x10xbf16, #tpu.memory_space<vmem>>, vector<128x10xbf16>
    %c0_3 = arith.constant 0 : index
    %c0_4 = arith.constant 0 : index
    %2 = vector.load %arg4[%c0_3, %c0_4] : memref<1x128xf32, #tpu.memory_space<vmem>>, vector<1x128xf32>
    %3 = vector.shape_cast %2 : vector<1x128xf32> to vector<1x128xf32>
    %4 = vector.broadcast %3 : vector<1x128xf32> to vector<128x128xf32>
    %5 = vector.extract_strided_slice %0 {offsets = [0, 0], sizes = [128, 1], strides = [1, 1]} : vector<128x2xi32> to vector<128x1xi32>
    %6 = tpu.iota {dimensions = array<i32: 1>} : vector<128x128xi32>
    %7 = vector.broadcast %5 : vector<128x1xi32> to vector<128x128xi32>
    %8 = arith.cmpi eq, %7, %6 : vector<128x128xi32>
    %9 = arith.extui %8 : vector<128x128xi1> to vector<128x128xi32>
    %10 = arith.sitofp %9 : vector<128x128xi32> to vector<128x128xf32>
    %11 = arith.truncf %10 : vector<128x128xf32> to vector<128x128xbf16>
    %cst = arith.constant dense<0.000000e+00> : vector<128x10xf32>
    %12 = tpu.matmul %11, %1, %cst {dimension_numbers = #tpu.dot_dimension_numbers<[1], [0], [0], [1], [0, 0, 1, 1], [], []>} : vector<128x128xbf16>, vector<128x10xbf16>, vector<128x10xf32> -> vector<128x10xf32>
    %13 = arith.truncf %12 : vector<128x10xf32> to vector<128x10xbf16>
    %c0_5 = arith.constant 0 : index
    %c0_6 = arith.constant 0 : index
    %c0_7 = arith.constant 0 : index
    %14 = vector.load %arg3[%c0_5, %c0_6, %c0_7] : memref<2x10x128xbf16, #tpu.memory_space<vmem>>, vector<1x10x128xbf16>
    %15 = vector.shape_cast %14 : vector<1x10x128xbf16> to vector<10x128xbf16>
    %cst_8 = arith.constant dense<0.000000e+00> : vector<128x128xf32>
    %16 = tpu.matmul %13, %15, %cst_8 {dimension_numbers = #tpu.dot_dimension_numbers<[1], [0], [0], [1], [0, 0, 1, 1], [], []>} : vector<128x10xbf16>, vector<10x128xbf16>, vector<128x128xf32> -> vector<128x128xf32>
    %17 = arith.addf %4, %16 : vector<128x128xf32>
    %18 = vector.extract_strided_slice %0 {offsets = [0, 1], sizes = [128, 1], strides = [1, 1]} : vector<128x2xi32> to vector<128x1xi32>
    %19 = tpu.iota {dimensions = array<i32: 1>} : vector<128x128xi32>
    %20 = vector.broadcast %18 : vector<128x1xi32> to vector<128x128xi32>
    %21 = arith.cmpi eq, %20, %19 : vector<128x128xi32>
    %22 = arith.extui %21 : vector<128x128xi1> to vector<128x128xi32>
    %23 = arith.sitofp %22 : vector<128x128xi32> to vector<128x128xf32>
    %24 = arith.truncf %23 : vector<128x128xf32> to vector<128x128xbf16>
    %cst_9 = arith.constant dense<0.000000e+00> : vector<128x10xf32>
    %25 = tpu.matmul %24, %1, %cst_9 {dimension_numbers = #tpu.dot_dimension_numbers<[1], [0], [0], [1], [0, 0, 1, 1], [], []>} : vector<128x128xbf16>, vector<128x10xbf16>, vector<128x10xf32> -> vector<128x10xf32>
    %26 = arith.truncf %25 : vector<128x10xf32> to vector<128x10xbf16>
    %c1 = arith.constant 1 : index
    %c0_10 = arith.constant 0 : index
    %c0_11 = arith.constant 0 : index
    %27 = vector.load %arg3[%c1, %c0_10, %c0_11] : memref<2x10x128xbf16, #tpu.memory_space<vmem>>, vector<1x10x128xbf16>
    %28 = vector.shape_cast %27 : vector<1x10x128xbf16> to vector<10x128xbf16>
    %cst_12 = arith.constant dense<0.000000e+00> : vector<128x128xf32>
    %29 = tpu.matmul %26, %28, %cst_12 {dimension_numbers = #tpu.dot_dimension_numbers<[1], [0], [0], [1], [0, 0, 1, 1], [], []>} : vector<128x10xbf16>, vector<10x128xbf16>, vector<128x128xf32> -> vector<128x128xf32>
    %30 = arith.addf %17, %29 : vector<128x128xf32>
    %cst_13 = arith.constant 0.000000e+00 : f32
    %31 = vector.broadcast %cst_13 : f32 to vector<128x128xf32>
    %32 = arith.maximumf %30, %31 : vector<128x128xf32>
    %33 = arith.truncf %32 : vector<128x128xf32> to vector<128x128xbf16>
    %c0_14 = arith.constant 0 : index
    %c0_15 = arith.constant 0 : index
    %34 = vector.load %arg5[%c0_14, %c0_15] : memref<128x128xbf16, #tpu.memory_space<vmem>>, vector<128x128xbf16>
    %cst_16 = arith.constant dense<0.000000e+00> : vector<128x128xf32>
    %35 = tpu.matmul %33, %34, %cst_16 {dimension_numbers = #tpu.dot_dimension_numbers<[1], [0], [0], [1], [0, 0, 1, 1], [], []>} : vector<128x128xbf16>, vector<128x128xbf16>, vector<128x128xf32> -> vector<128x128xf32>
    %c0_17 = arith.constant 0 : index
    %c0_18 = arith.constant 0 : index
    %36 = vector.load %arg6[%c0_17, %c0_18] : memref<1x128xf32, #tpu.memory_space<vmem>>, vector<1x128xf32>
    %37 = vector.broadcast %36 : vector<1x128xf32> to vector<128x128xf32>
    %38 = arith.addf %35, %37 : vector<128x128xf32>
    %cst_19 = arith.constant dense<0xFF800000> : vector<128xf32>
    %39 = vector.multi_reduction <maximumf>, %38, %cst_19 [1] : vector<128x128xf32> to vector<128xf32>
    %40 = vector.shape_cast %39 : vector<128xf32> to vector<128x1xf32>
    %41 = vector.broadcast %40 : vector<128x1xf32> to vector<128x128xf32>
    %42 = arith.subf %38, %41 : vector<128x128xf32>
    %43 = math.exp %42 : vector<128x128xf32>
    %cst_20 = arith.constant dense<0.000000e+00> : vector<128xf32>
    %44 = vector.multi_reduction <add>, %43, %cst_20 [1] : vector<128x128xf32> to vector<128xf32>
    %45 = vector.shape_cast %44 : vector<128xf32> to vector<128x1xf32>
    %46 = math.log %45 : vector<128x1xf32>
    %47 = vector.broadcast %46 : vector<128x1xf32> to vector<128x128xf32>
    %48 = arith.subf %42, %47 : vector<128x128xf32>
    %c0_21 = arith.constant 0 : index
    %c0_22 = arith.constant 0 : index
    %49 = vector.load %arg7[%c0_21, %c0_22] : memref<128x128xf32, #tpu.memory_space<vmem>>, vector<128x128xf32>
    tpu.vector_store %arg7[%c0_21, %c0_22], %48 {strides = array<i32>} : memref<128x128xf32, #tpu.memory_space<vmem>>, vector<128x128xf32>,
    return
  }
  func.func @transform_0(%arg0: i32) -> (i32, i32) {
    %c0_i32 = arith.constant 0 : i32
    %c0_i32_0 = arith.constant 0 : i32
    return %arg0, %c0_i32 : i32, i32
  }
  func.func @transform_1(%arg0: i32) -> (i32, i32) {
    %c0_i32 = arith.constant 0 : i32
    %c0_i32_0 = arith.constant 0 : i32
    %c0_i32_1 = arith.constant 0 : i32
    return %c0_i32, %c0_i32_0 : i32, i32
  }
  func.func @transform_2(%arg0: i32) -> (i32, i32, i32) {
    %c0_i32 = arith.constant 0 : i32
    %c0_i32_0 = arith.constant 0 : i32
    %c0_i32_1 = arith.constant 0 : i32
    %c0_i32_2 = arith.constant 0 : i32
    return %c0_i32, %c0_i32_0, %c0_i32_1 : i32, i32, i32
  }
  func.func @transform_3(%arg0: i32) -> (i32, i32) {
    %c0_i32 = arith.constant 0 : i32
    %c0_i32_0 = arith.constant 0 : i32
    %c0_i32_1 = arith.constant 0 : i32
    return %c0_i32, %c0_i32_0 : i32, i32
  }
  func.func @transform_4(%arg0: i32) -> (i32, i32) {
    %c0_i32 = arith.constant 0 : i32
    %c0_i32_0 = arith.constant 0 : i32
    %c0_i32_1 = arith.constant 0 : i32
    return %c0_i32, %c0_i32_0 : i32, i32
  }
  func.func @transform_5(%arg0: i32) -> (i32, i32) {
    %c0_i32 = arith.constant 0 : i32
    %c0_i32_0 = arith.constant 0 : i32
    %c0_i32_1 = arith.constant 0 : i32
    return %c0_i32, %c0_i32_0 : i32, i32
  }
  func.func @transform_6(%arg0: i32) -> (i32, i32) {
    %c0_i32 = arith.constant 0 : i32
    %c0_i32_0 = arith.constant 0 : i32
    return %arg0, %c0_i32 : i32, i32
  }
}

</mosaic_0001>

<llo_original>
// kernel: ngram_forward_batched.1
$region0: #{ngram_forward_batched.1}
  #allocation0 [shape = 'u32[]', space=smem, size = 0x4, offset = 0x4, fixed_abs, tag = 'smem constant byte address 0x4 - core index']
  #allocation1 [shape = 'u32[144,128]{1,0:T(1,128)}', space=vmem, size = 0x12000, scoped, tag = 'internal scratch']
  %s0 = inlined_call_operand.vmem [shape: s32[256,2], index: 0, kind: input, shape index: {}]
  %s1 = inlined_call_operand.vmem [shape: bf16[128,10], index: 1, kind: input, shape index: {}]
  %s2 = inlined_call_operand.vmem [shape: bf16[2,10,128], index: 2, kind: input, shape index: {}]
  %s3 = inlined_call_operand.vmem [shape: f32[1,128], index: 3, kind: input, shape index: {}]
  %s4 = inlined_call_operand.vmem [shape: bf16[128,128], index: 4, kind: input, shape index: {}]
  %s5 = inlined_call_operand.vmem [shape: f32[1,128], index: 5, kind: input, shape index: {}]
  %s6 = inlined_call_operand.vmem [shape: f32[256,128], index: 6, kind: output, shape index: {}]
  %s7 = sld [smem:[#allocation0]]
  $region57: #{ngram_forward_batched.1} parent=0
    _
  %s9 = ssub.s32 1, %s7
  %s10 = scalar_select 0, %s9, %s7
  loop: start=0, step=1, limit=4
  $region2: #{ngram_forward_batched.1} parent=0 // loop_pre_header
    _
  $region3: #{ngram_forward_batched.1} parent=0 // loop_header
    %s12 = sphi 0, %s16
    %p13 = scmp.ge.s32.totalorder %s12, 4
    %s22 = sphi 0, %s24
    %s25 = sphi 0, %s22
    %s26 = sphi 0, %s25
    %s42 = sphi 0, %s26
    %s46 = sphi 0, %s46
    %s48 = sphi 0, %s46
    %s49 = sphi 0, %s48
    %s63 = sphi 0, %s49
    %s67 = sphi 0, %s67
    %s69 = sphi 0, %s67
    %s70 = sphi 0, %s69
    %s84 = sphi 0, %s70
    %s88 = sphi 0, %s88
    %s90 = sphi 0, %s88
    %s91 = sphi 0, %s90
    %s105 = sphi 0, %s91
    %s109 = sphi 0, %s109
    %s111 = sphi 0, %s109
    %s112 = sphi 0, %s111
    %s126 = sphi 0, %s112
    %s130 = sphi 0, %s130
    %s132 = sphi 0, %s130
    %s133 = sphi 0, %s132
    %s147 = sphi 0, %s133
    %s153 = sphi 0, %s155
    %s156 = sphi 0, %s153
    %s157 = sphi 0, %s156
    %s173 = sphi 0, %s157
  $region4: #{ngram_forward_batched.1} parent=0 // loop_header_branch
    %15 = sbr.rel (%p13) target = $region8
  $region5: #{ngram_forward_batched.1} parent=0 // loop_body
    %s17 = ssub.s32 %s12, 1
    %s18 = ssub.s32 %s12, 2
    %s19 = sadd.s32 %s12, 1
    %s20 = ssub.s32 %s12, %s19
    %p21 = scmp.eq.s32.totalorder %s20, 0
    %s23 = sadd.s32 %s22, 1
    %s24 = scalar_select %p21, %s22, %s23
    %p27 = pneg %p21
    %p28 = scmp.eq.s32.totalorder %s12, 1
    %p29 = por %p27, %p28
    %p30 = scmp.ne.s32.totalorder %s22, %s25
    %p31 = scmp.eq.s32.totalorder %s12, 0
    %p32 = por %p30, %p31
    %p33 = scmp.ne.s32.totalorder %s22, %s25
    %p34 = scmp.eq.s32.totalorder %s17, 1
    %p35 = por %p33, %p34
    %p36 = scmp.ne.s32.totalorder %s25, %s26
    %p37 = scmp.eq.s32.totalorder %s17, 0
    %p38 = por %p36, %p37
    %p39 = scmp.ne.s32.totalorder %s25, %s26
    %p40 = scmp.eq.s32.totalorder %s18, 1
    %p41 = por %p39, %p40
    %p43 = scmp.ne.s32.totalorder %s26, %s42
    %p44 = scmp.eq.s32.totalorder %s18, 0
    %p45 = por %p43, %p44
    %s47 = sadd.s32 %s46, 1
    %p50 = scmp.eq.s32.totalorder %s12, 1
    %p51 = scmp.ne.s32.totalorder %s46, %s48
    %p52 = scmp.eq.s32.totalorder %s12, 0
    %p53 = por %p51, %p52
    %p54 = scmp.ne.s32.totalorder %s46, %s48
    %p55 = scmp.eq.s32.totalorder %s17, 1
    %p56 = por %p54, %p55
    %p57 = scmp.ne.s32.totalorder %s48, %s49
    %p58 = scmp.eq.s32.totalorder %s17, 0
    %p59 = por %p57, %p58
    %p60 = scmp.ne.s32.totalorder %s48, %s49
    %p61 = scmp.eq.s32.totalorder %s18, 1
    %p62 = por %p60, %p61
    %p64 = scmp.ne.s32.totalorder %s49, %s63
    %p65 = scmp.eq.s32.totalorder %s18, 0
    %p66 = por %p64, %p65
    %s68 = sadd.s32 %s67, 1
    %p71 = scmp.eq.s32.totalorder %s12, 1
    %p72 = scmp.ne.s32.totalorder %s67, %s69
    %p73 = scmp.eq.s32.totalorder %s12, 0
    %p74 = por %p72, %p73
    %p75 = scmp.ne.s32.totalorder %s67, %s69
    %p76 = scmp.eq.s32.totalorder %s17, 1
    %p77 = por %p75, %p76
    %p78 = scmp.ne.s32.totalorder %s69, %s70
    %p79 = scmp.eq.s32.totalorder %s17, 0
    %p80 = por %p78, %p79
    %p81 = scmp.ne.s32.totalorder %s69, %s70
    %p82 = scmp.eq.s32.totalorder %s18, 1
    %p83 = por %p81, %p82
    %p85 = scmp.ne.s32.totalorder %s70, %s84
    %p86 = scmp.eq.s32.totalorder %s18, 0
    %p87 = por %p85, %p86
    %s89 = sadd.s32 %s88, 1
    %p92 = scmp.eq.s32.totalorder %s12, 1
    %p93 = scmp.ne.s32.totalorder %s88, %s90
    %p94 = scmp.eq.s32.totalorder %s12, 0
    %p95 = por %p93, %p94
    %p96 = scmp.ne.s32.totalorder %s88, %s90
    %p97 = scmp.eq.s32.totalorder %s17, 1
    %p98 = por %p96, %p97
    %p99 = scmp.ne.s32.totalorder %s90, %s91
    %p100 = scmp.eq.s32.totalorder %s17, 0
    %p101 = por %p99, %p100
    %p102 = scmp.ne.s32.totalorder %s90, %s91
    %p103 = scmp.eq.s32.totalorder %s18, 1
    %p104 = por %p102, %p103
    %p106 = scmp.ne.s32.totalorder %s91, %s105
    %p107 = scmp.eq.s32.totalorder %s18, 0
    %p108 = por %p106, %p107
    %s110 = sadd.s32 %s109, 1
    %p113 = scmp.eq.s32.totalorder %s12, 1
    %p114 = scmp.ne.s32.totalorder %s109, %s111
    %p115 = scmp.eq.s32.totalorder %s12, 0
    %p116 = por %p114, %p115
    %p117 = scmp.ne.s32.totalorder %s109, %s111
    %p118 = scmp.eq.s32.totalorder %s17, 1
    %p119 = por %p117, %p118
    %p120 = scmp.ne.s32.totalorder %s111, %s112
    %p121 = scmp.eq.s32.totalorder %s17, 0
    %p122 = por %p120, %p121
    %p123 = scmp.ne.s32.totalorder %s111, %s112
    %p124 = scmp.eq.s32.totalorder %s18, 1
    %p125 = por %p123, %p124
    %p127 = scmp.ne.s32.totalorder %s112, %s126
    %p128 = scmp.eq.s32.totalorder %s18, 0
    %p129 = por %p127, %p128
    %s131 = sadd.s32 %s130, 1
    %p134 = scmp.eq.s32.totalorder %s12, 1
    %p135 = scmp.ne.s32.totalorder %s130, %s132
    %p136 = scmp.eq.s32.totalorder %s12, 0
    %p137 = por %p135, %p136
    %p138 = scmp.ne.s32.totalorder %s130, %s132
    %p139 = scmp.eq.s32.totalorder %s17, 1
    %p140 = por %p138, %p139
    %p141 = scmp.ne.s32.totalorder %s132, %s133
    %p142 = scmp.eq.s32.totalorder %s17, 0
    %p143 = por %p141, %p142
    %p144 = scmp.ne.s32.totalorder %s132, %s133
    %p145 = scmp.eq.s32.totalorder %s18, 1
    %p146 = por %p144, %p145
    %p148 = scmp.ne.s32.totalorder %s133, %s147
    %p149 = scmp.eq.s32.totalorder %s18, 0
    %p150 = por %p148, %p149
    %s151 = ssub.s32 %s12, %s19
    %p152 = scmp.eq.s32.totalorder %s151, 0
    %s154 = sadd.s32 %s153, 1
    %s155 = scalar_select %p152, %s153, %s154
    %p158 = pneg %p152
    %p159 = scmp.eq.s32.totalorder %s12, 1
    %p160 = por %p158, %p159
    %p161 = scmp.ne.s32.totalorder %s153, %s156
    %p162 = scmp.eq.s32.totalorder %s12, 0
    %p163 = por %p161, %p162
    %p164 = scmp.ne.s32.totalorder %s153, %s156
    %p165 = scmp.eq.s32.totalorder %s17, 1
    %p166 = por %p164, %p165
    %p167 = scmp.ne.s32.totalorder %s156, %s157
    %p168 = scmp.eq.s32.totalorder %s17, 0
    %p169 = por %p167, %p168
    %p170 = scmp.ne.s32.totalorder %s156, %s157
    %p171 = scmp.eq.s32.totalorder %s18, 1
    %p172 = por %p170, %p171
    %p174 = scmp.ne.s32.totalorder %s157, %s173
    %p175 = scmp.eq.s32.totalorder %s18, 0
    %p176 = por %p174, %p175
    %p177 = scmp.le.s32.totalorder 1, %s12
    %p178 = scmp.lt.s32.totalorder %s12, 3
    %p179 = pnand %p177, %p178
    %p180 = pneg %p179
    // Predicated region
    $region9: #{ngram_forward_batched.1} parent=5 // pred_check
      _
    $region10: #{ngram_forward_batched.1} parent=5 // pred_check_branch
      %182 = sbr.rel (%p179) target = $region12
    $region11: #{ngram_forward_batched.1} parent=5 // pred_region
      %s183 = ssub.s32 %s12, 1
      // Predicated region
      $region13: #{ngram_forward_batched.1} parent=11 // pred_check
        %p184 = pneg %p59
      $region14: #{ngram_forward_batched.1} parent=11 // pred_check_branch
        %186 = sbr.rel (%p184) target = $region16
      $region15: #{ngram_forward_batched.1} parent=11 // pred_region
        _
      $region16: #{ngram_forward_batched.1} parent=11 // pred_fallthru
        _
      // Predicated region
      $region17: #{ngram_forward_batched.1} parent=11 // pred_check
        %p187 = pneg %p80
      $region18: #{ngram_forward_batched.1} parent=11 // pred_check_branch
        %189 = sbr.rel (%p187) target = $region20
      $region19: #{ngram_forward_batched.1} parent=11 // pred_region
        _
      $region20: #{ngram_forward_batched.1} parent=11 // pred_fallthru
        _
      // Predicated region
      $region21: #{ngram_forward_batched.1} parent=11 // pred_check
        %p190 = pneg %p101
      $region22: #{ngram_forward_batched.1} parent=11 // pred_check_branch
        %192 = sbr.rel (%p190) target = $region24
      $region23: #{ngram_forward_batched.1} parent=11 // pred_region
        _
      $region24: #{ngram_forward_batched.1} parent=11 // pred_fallthru
        _
      // Predicated region
      $region25: #{ngram_forward_batched.1} parent=11 // pred_check
        %p193 = pneg %p122
      $region26: #{ngram_forward_batched.1} parent=11 // pred_check_branch
        %195 = sbr.rel (%p193) target = $region28
      $region27: #{ngram_forward_batched.1} parent=11 // pred_region
        _
      $region28: #{ngram_forward_batched.1} parent=11 // pred_fallthru
        _
      // Predicated region
      $region29: #{ngram_forward_batched.1} parent=11 // pred_check
        %p196 = pneg %p143
      $region30: #{ngram_forward_batched.1} parent=11 // pred_check_branch
        %198 = sbr.rel (%p196) target = $region32
      $region31: #{ngram_forward_batched.1} parent=11 // pred_region
        _
      $region32: #{ngram_forward_batched.1} parent=11 // pred_fallthru
        _
    $region12: #{ngram_forward_batched.1} parent=5 // pred_fallthru
      _
    %p199 = scmp.lt.s32.totalorder %s12, 2
    // Predicated region
    $region33: #{ngram_forward_batched.1} parent=5 // pred_check
      %p200 = pneg %p199
    $region34: #{ngram_forward_batched.1} parent=5 // pred_check_branch
      %202 = sbr.rel (%p200) target = $region36
    $region35: #{ngram_forward_batched.1} parent=5 // pred_region
      // Predicated region
      $region37: #{ngram_forward_batched.1} parent=35 // pred_check
        %p203 = pneg %p32
      $region38: #{ngram_forward_batched.1} parent=35 // pred_check_branch
        %205 = sbr.rel (%p203) target = $region40
      $region39: #{ngram_forward_batched.1} parent=35 // pred_region
        %s206 = smul.u32 16, %s12
        %p207 = scmp.lt.s32.totalorder %s206, 31
        %s208 = scalar_select %p207, %s206, 31
        %s209 = smul.addr %s208, 8
        %s210 = scalar_lea.vmem %s0, %s209
        %s211 = smul.u32 16, %s12
      $region40: #{ngram_forward_batched.1} parent=35 // pred_fallthru
        _
    $region36: #{ngram_forward_batched.1} parent=5 // pred_fallthru
      _
    %p212 = scmp.le.s32.totalorder 1, %s12
    %p213 = scmp.lt.s32.totalorder %s12, 3
    %p214 = pnand %p212, %p213
    %p215 = pneg %p214
    // Predicated region
    $region41: #{ngram_forward_batched.1} parent=5 // pred_check
      _
    $region42: #{ngram_forward_batched.1} parent=5 // pred_check_branch
      %217 = sbr.rel (%p214) target = $region44
    $region43: #{ngram_forward_batched.1} parent=5 // pred_region
      %s218 = ssub.s32 %s12, 1
      %s219 = smul.u32 16, %s17
      %p220 = scmp.lt.s32.totalorder %s219, 31
      %s221 = scalar_select %p220, %s219, 31
      %s222 = smul.addr %s221, 8
      %s223 = scalar_lea.vmem %s0, %s222
      %p224 = pneg %p38
      %p225 = pneg %p35
      %p226 = pneg %p59
      %p227 = pneg %p56
      %p228 = pneg %p80
      %p229 = pneg %p77
      %p230 = pneg %p101
      %p231 = pneg %p98
      %p232 = pneg %p122
      %p233 = pneg %p119
      %p234 = pneg %p143
      %p235 = pneg %p140
      %p236 = pneg %p169
      %p237 = pneg %p166
      %s238 = smul.u32 16, %s17
      %p239 = scmp.lt.s32.totalorder %s238, 31
      %s240 = scalar_select %p239, %s238, 31
      %s241 = smul.addr %s240, 8
      %s242 = scalar_lea.vmem %s6, %s241
      %s243 = smul.u32 16, %s17
      %p244 = scmp.lt.s32.totalorder %s243, 31
      %s245 = scalar_select %p244, %s243, 31
      %s246 = smul.addr %s245, 8
      %s247 = scalar_lea.vmem %s0, %s246
      %s248 = smul.u32 16, %s17
      %s249 = smul.u32 16, %s17
      %p250 = scmp.lt.s32.totalorder %s249, 31
      %s251 = scalar_select %p250, %s249, 31
      %s252 = smul.addr %s251, 8
      %s253 = scalar_lea.vmem %s6, %s252
      %s254 = smul.u32 16, %s17
      %v256 = vld [vmem:[%s247] sm:$0xff]
      %v257 = vld [vmem:[%s247 + $0x8] sm:$0xff]
      %v258 = vld [vmem:[%s247 + $0x10] sm:$0xff]
      %v259 = vld [vmem:[%s247 + $0x18] sm:$0xff]
      %v260 = vld [vmem:[%s247 + $0x20] sm:$0xff]
      %v261 = vld [vmem:[%s247 + $0x28] sm:$0xff]
      %v262 = vld [vmem:[%s247 + $0x30] sm:$0xff]
      %v263 = vld [vmem:[%s247 + $0x38] sm:$0xff]
      %v264 = vld [vmem:[%s247 + $0x40] sm:$0xff]
      %v265 = vld [vmem:[%s247 + $0x48] sm:$0xff]
      %v266 = vld [vmem:[%s247 + $0x50] sm:$0xff]
      %v267 = vld [vmem:[%s247 + $0x58] sm:$0xff]
      %v268 = vld [vmem:[%s247 + $0x60] sm:$0xff]
      %v269 = vld [vmem:[%s247 + $0x68] sm:$0xff]
      %v270 = vld [vmem:[%s247 + $0x70] sm:$0xff]
      %v271 = vld [vmem:[%s247 + $0x78] sm:$0xff]
      %v272 = vld [vmem:[%s1] sm:$0xf]
      %v273 = vld [vmem:[%s1 + $0x4] sm:$0xf]
      %v274 = vld [vmem:[%s1 + $0x8] sm:$0xf]
      %v275 = vld [vmem:[%s1 + $0xc] sm:$0xf]
      %v276 = vld [vmem:[%s1 + $0x10] sm:$0xf]
      %v277 = vld [vmem:[%s1 + $0x14] sm:$0xf]
      %v278 = vld [vmem:[%s1 + $0x18] sm:$0xf]
      %v279 = vld [vmem:[%s1 + $0x1c] sm:$0xf]
      %v280 = vld [vmem:[%s1 + $0x20] sm:$0xf]
      %v281 = vld [vmem:[%s1 + $0x24] sm:$0xf]
      %v282 = vld [vmem:[%s1 + $0x28] sm:$0xf]
      %v283 = vld [vmem:[%s1 + $0x2c] sm:$0xf]
      %v284 = vld [vmem:[%s1 + $0x30] sm:$0xf]
      %v285 = vld [vmem:[%s1 + $0x34] sm:$0xf]
      %v286 = vld [vmem:[%s1 + $0x38] sm:$0xf]
      %v287 = vld [vmem:[%s1 + $0x3c] sm:$0xf]
      %v288 = vld [vmem:[%s3] sm:$0x1]
      %v290 = vlaneseq
      %v291 = vshrl.u32 %v290, 7
      %v292 = vsub.s32 0, %v291
      %v293 = vrot.slane %v288, %v292
      %v295 = vlaneseq
      %v296 = vand.u32 %v295, 127
      %297 = vset.pattern.permute.xlu0 0
      %298 = vperm.xlu0 %297, %v256
      %v299 = vpop.permute.xlu0 %298
      %300 = vset.pattern.permute.xlu0 0
      %301 = vperm.xlu0 %300, %v257
      %v302 = vpop.permute.xlu0 %301
      %303 = vset.pattern.permute.xlu0 0
      %304 = vperm.xlu0 %303, %v258
      %v305 = vpop.permute.xlu0 %304
      %306 = vset.pattern.permute.xlu0 0
      %307 = vperm.xlu0 %306, %v259
      %v308 = vpop.permute.xlu0 %307
      %309 = vset.pattern.permute.xlu0 0
      %310 = vperm.xlu0 %309, %v260
      %v311 = vpop.permute.xlu0 %310
      %312 = vset.pattern.permute.xlu0 0
      %313 = vperm.xlu0 %312, %v261
      %v314 = vpop.permute.xlu0 %313
      %315 = vset.pattern.permute.xlu0 0
      %316 = vperm.xlu0 %315, %v262
      %v317 = vpop.permute.xlu0 %316
      %318 = vset.pattern.permute.xlu0 0
      %319 = vperm.xlu0 %318, %v263
      %v320 = vpop.permute.xlu0 %319
      %321 = vset.pattern.permute.xlu0 0
      %322 = vperm.xlu0 %321, %v264
      %v323 = vpop.permute.xlu0 %322
      %324 = vset.pattern.permute.xlu0 0
      %325 = vperm.xlu0 %324, %v265
      %v326 = vpop.permute.xlu0 %325
      %327 = vset.pattern.permute.xlu0 0
      %328 = vperm.xlu0 %327, %v266
      %v329 = vpop.permute.xlu0 %328
      %330 = vset.pattern.permute.xlu0 0
      %331 = vperm.xlu0 %330, %v267
      %v332 = vpop.permute.xlu0 %331
      %333 = vset.pattern.permute.xlu0 0
      %334 = vperm.xlu0 %333, %v268
      %v335 = vpop.permute.xlu0 %334
      %336 = vset.pattern.permute.xlu0 0
      %337 = vperm.xlu0 %336, %v269
      %v338 = vpop.permute.xlu0 %337
      %339 = vset.pattern.permute.xlu0 0
      %340 = vperm.xlu0 %339, %v270
      %v341 = vpop.permute.xlu0 %340
      %342 = vset.pattern.permute.xlu0 0
      %343 = vperm.xlu0 %342, %v271
      %v344 = vpop.permute.xlu0 %343
      %vm345 = vcmp.eq.s32.totalorder %v299, %v296
      %vm346 = vcmp.eq.s32.totalorder %v302, %v296
      %vm347 = vcmp.eq.s32.totalorder %v305, %v296
      %vm348 = vcmp.eq.s32.totalorder %v308, %v296
      %vm349 = vcmp.eq.s32.totalorder %v311, %v296
      %vm350 = vcmp.eq.s32.totalorder %v314, %v296
      %vm351 = vcmp.eq.s32.totalorder %v317, %v296
      %vm352 = vcmp.eq.s32.totalorder %v320, %v296
      %vm353 = vcmp.eq.s32.totalorder %v323, %v296
      %vm354 = vcmp.eq.s32.totalorder %v326, %v296
      %vm355 = vcmp.eq.s32.totalorder %v329, %v296
      %vm356 = vcmp.eq.s32.totalorder %v332, %v296
      %vm357 = vcmp.eq.s32.totalorder %v335, %v296
      %vm358 = vcmp.eq.s32.totalorder %v338, %v296
      %vm359 = vcmp.eq.s32.totalorder %v341, %v296
      %vm360 = vcmp.eq.s32.totalorder %v344, %v296
      %v361 = vsel %vm345, 1, 0
      %v362 = vsel %vm346, 1, 0
      %v363 = vsel %vm347, 1, 0
      %v364 = vsel %vm348, 1, 0
      %v365 = vsel %vm349, 1, 0
      %v366 = vsel %vm350, 1, 0
      %v367 = vsel %vm351, 1, 0
      %v368 = vsel %vm352, 1, 0
      %v369 = vsel %vm353, 1, 0
      %v370 = vsel %vm354, 1, 0
      %v371 = vsel %vm355, 1, 0
      %v372 = vsel %vm356, 1, 0
      %v373 = vsel %vm357, 1, 0
      %v374 = vsel %vm358, 1, 0
      %v375 = vsel %vm359, 1, 0
      %v376 = vsel %vm360, 1, 0
      %v377 = vcvt.s32.f32 %v361
      %v378 = vcvt.s32.f32 %v362
      %v379 = vcvt.s32.f32 %v363
      %v380 = vcvt.s32.f32 %v364
      %v381 = vcvt.s32.f32 %v365
      %v382 = vcvt.s32.f32 %v366
      %v383 = vcvt.s32.f32 %v367
      %v384 = vcvt.s32.f32 %v368
      %v385 = vcvt.s32.f32 %v369
      %v386 = vcvt.s32.f32 %v370
      %v387 = vcvt.s32.f32 %v371
      %v388 = vcvt.s32.f32 %v372
      %v389 = vcvt.s32.f32 %v373
      %v390 = vcvt.s32.f32 %v374
      %v391 = vcvt.s32.f32 %v375
      %v392 = vcvt.s32.f32 %v376
      %v393 = vpack.c.bf16 %v378, %v377
      %v394 = vpack.c.bf16 %v380, %v379
      %v395 = vpack.c.bf16 %v382, %v381
      %v396 = vpack.c.bf16 %v384, %v383
      %v397 = vpack.c.bf16 %v386, %v385
      %v398 = vpack.c.bf16 %v388, %v387
      %v399 = vpack.c.bf16 %v390, %v389
      %v400 = vpack.c.bf16 %v392, %v391
      %v417 = vunpack.c.l.b16 %v272
      %v418 = vunpack.c.l.b16 %v273
      %v419 = vunpack.c.l.b16 %v274
      %v420 = vunpack.c.l.b16 %v275
      %v421 = vunpack.c.l.b16 %v276
      %v422 = vunpack.c.l.b16 %v277
      %v423 = vunpack.c.l.b16 %v278
      %v424 = vunpack.c.l.b16 %v279
      %v425 = vunpack.c.l.b16 %v280
      %v426 = vunpack.c.l.b16 %v281
      %v427 = vunpack.c.l.b16 %v282
      %v428 = vunpack.c.l.b16 %v283
      %v429 = vunpack.c.l.b16 %v284
      %v430 = vunpack.c.l.b16 %v285
      %v431 = vunpack.c.l.b16 %v286
      %v432 = vunpack.c.l.b16 %v287
      %v433 = vpack.c.b16 %v418, %v417
      %v434 = vpack.c.b16 %v420, %v419
      %v435 = vpack.c.b16 %v422, %v421
      %v436 = vpack.c.b16 %v424, %v423
      %v437 = vpack.c.b16 %v426, %v425
      %v438 = vpack.c.b16 %v428, %v427
      %v439 = vpack.c.b16 %v430, %v429
      %v440 = vpack.c.b16 %v432, %v431
      %449 = vmatprep.subr.bf16.mxu0 0
      %450 = vmatpush1.bf16.msra.mxu0 %v433
      %451 = vmatprep.subr.bf16.mxu0 0
      %452 = vmatpush1.bf16.msra.mxu0 %v434
      %453 = vmatprep.subr.bf16.mxu0 0
      %454 = vmatpush1.bf16.msra.mxu0 %v435
      %455 = vmatprep.subr.bf16.mxu0 0
      %456 = vmatpush1.bf16.msra.mxu0 %v436
      %457 = vmatprep.subr.bf16.mxu0 0
      %458 = vmatpush1.bf16.msra.mxu0 %v437
      %459 = vmatprep.subr.bf16.mxu0 0
      %460 = vmatpush1.bf16.msra.mxu0 %v438
      %461 = vmatprep.subr.bf16.mxu0 0
      %462 = vmatpush1.bf16.msra.mxu0 %v439
      %463 = vmatprep.subr.bf16.mxu0 0
      %464 = vmatpush1.bf16.msra.mxu0 %v440
      %465 = vmatprep.subr.bf16.mxu0 0
      %466 = vmatpush1.bf16.msra.mxu0 0
      %467 = vmatprep.subr.bf16.mxu0 0
      %468 = vmatpush1.bf16.msra.mxu0 0
      %469 = vmatprep.subr.bf16.mxu0 0
      %470 = vmatpush1.bf16.msra.mxu0 0
      %471 = vmatprep.subr.bf16.mxu0 0
      %472 = vmatpush1.bf16.msra.mxu0 0
      %473 = vmatprep.subr.bf16.mxu0 0
      %474 = vmatpush1.bf16.msra.mxu0 0
      %475 = vmatprep.subr.bf16.mxu0 0
      %476 = vmatpush1.bf16.msra.mxu0 0
      %477 = vmatprep.subr.bf16.mxu0 0
      %478 = vmatpush1.bf16.msra.mxu0 0
      %479 = vmatprep.subr.bf16.mxu0 0
      %480 = vmatpush1.bf16.msra.mxu0 0
      %481 = vmatprep.mubr.bf16.mxu0 0
      %482 = vmatmul.mubr.bf16.gmra.mrb[0].mxu0 %v393
      %v483 = vpop.f32.mrb[0].mxu0
      %v484 = vadd.f32 0.0, %v483
      %v485 = vpop.f32.mrb[0].mxu0
      %v486 = vpop.f32.mrb[0].mxu0
      %v487 = vadd.f32 0.0, %v486
      %v488 = vpop.f32.mrb[0].mxu0
      %489 = vmatprep.mubr.bf16.mxu0 0
      %490 = vmatmul.mubr.bf16.gmra.mrb[0].mxu0 %v394
      %v491 = vpop.f32.mrb[0].mxu0
      %v492 = vadd.f32 0.0, %v491
      %v493 = vpop.f32.mrb[0].mxu0
      %v494 = vpop.f32.mrb[0].mxu0
      %v495 = vadd.f32 0.0, %v494
      %v496 = vpop.f32.mrb[0].mxu0
      %497 = vmatprep.mubr.bf16.mxu0 0
      %498 = vmatmul.mubr.bf16.gmra.mrb[0].mxu0 %v395
      %v499 = vpop.f32.mrb[0].mxu0
      %v500 = vadd.f32 0.0, %v499
      %v501 = vpop.f32.mrb[0].mxu0
      %v502 = vpop.f32.mrb[0].mxu0
      %v503 = vadd.f32 0.0, %v502
      %v504 = vpop.f32.mrb[0].mxu0
      %505 = vmatprep.mubr.bf16.mxu0 0
      %506 = vmatmul.mubr.bf16.gmra.mrb[0].mxu0 %v396
      %v507 = vpop.f32.mrb[0].mxu0
      %v508 = vadd.f32 0.0, %v507
      %v509 = vpop.f32.mrb[0].mxu0
      %v510 = vpop.f32.mrb[0].mxu0
      %v511 = vadd.f32 0.0, %v510
      %v512 = vpop.f32.mrb[0].mxu0
      %513 = vmatprep.mubr.bf16.mxu0 0
      %514 = vmatmul.mubr.bf16.gmra.mrb[0].mxu0 %v397
      %v515 = vpop.f32.mrb[0].mxu0
      %v516 = vadd.f32 0.0, %v515
      %v517 = vpop.f32.mrb[0].mxu0
      %v518 = vpop.f32.mrb[0].mxu0
      %v519 = vadd.f32 0.0, %v518
      %v520 = vpop.f32.mrb[0].mxu0
      %521 = vmatprep.mubr.bf16.mxu0 0
      %522 = vmatmul.mubr.bf16.gmra.mrb[0].mxu0 %v398
      %v523 = vpop.f32.mrb[0].mxu0
      %v524 = vadd.f32 0.0, %v523
      %v525 = vpop.f32.mrb[0].mxu0
      %v526 = vpop.f32.mrb[0].mxu0
      %v527 = vadd.f32 0.0, %v526
      %v528 = vpop.f32.mrb[0].mxu0
      %529 = vmatprep.mubr.bf16.mxu0 0
      %530 = vmatmul.mubr.bf16.gmra.mrb[0].mxu0 %v399
      %v531 = vpop.f32.mrb[0].mxu0
      %v532 = vadd.f32 0.0, %v531
      %v533 = vpop.f32.mrb[0].mxu0
      %v534 = vpop.f32.mrb[0].mxu0
      %v535 = vadd.f32 0.0, %v534
      %v536 = vpop.f32.mrb[0].mxu0
      %537 = vmatprep.mubr.bf16.mxu0 0
      %538 = vmatmul.mubr.bf16.gmra.mrb[0].mxu0 %v400
      %v539 = vpop.f32.mrb[0].mxu0
      %v540 = vadd.f32 0.0, %v539
      %v541 = vpop.f32.mrb[0].mxu0
      %v542 = vpop.f32.mrb[0].mxu0
      %v543 = vadd.f32 0.0, %v542
      %v544 = vpop.f32.mrb[0].mxu0
      %545 = vdwg.mxu0
      %v546 = vpack.c.bf16 %v487, %v484
      %v547 = vpack.c.bf16 %v495, %v492
      %v548 = vpack.c.bf16 %v503, %v500
      %v549 = vpack.c.bf16 %v511, %v508
      %v550 = vpack.c.bf16 %v519, %v516
      %v551 = vpack.c.bf16 %v527, %v524
      %v552 = vpack.c.bf16 %v535, %v532
      %v553 = vpack.c.bf16 %v543, %v540
      %v554 = vld [vmem:[%s2] sm:$0xf]
      %v555 = vld [vmem:[%s2 + $0x4] sm:$0x1]
      %v558 = vunpack.c.l.b16 %v554
      %v559 = vunpack.c.l.b16 %v555
      %v560 = vpack.c.b16 %v559, %v558
      %vm561 = vcmask 80896
      %v563 = vsel %vm561, %v546, 0
      %v566 = vsel %vm561, %v547, 0
      %v569 = vsel %vm561, %v548, 0
      %v572 = vsel %vm561, %v549, 0
      %v575 = vsel %vm561, %v550, 0
      %v578 = vsel %vm561, %v551, 0
      %v581 = vsel %vm561, %v552, 0
      %v584 = vsel %vm561, %v553, 0
      %vm586 = vcmask 1044480
      %v588 = vsel %vm586, %v560, 0
      %590 = vmatprep.subr.bf16.mxu0 0
      %591 = vmatpush1.bf16.msra.mxu0 %v588
      %592 = vmatprep.subr.bf16.mxu0 0
      %593 = vmatpush1.bf16.msra.mxu0 0
      %594 = vmatprep.subr.bf16.mxu0 0
      %595 = vmatpush1.bf16.msra.mxu0 0
      %596 = vmatprep.subr.bf16.mxu0 0
      %597 = vmatpush1.bf16.msra.mxu0 0
      %598 = vmatprep.subr.bf16.mxu0 0
      %599 = vmatpush1.bf16.msra.mxu0 0
      %600 = vmatprep.subr.bf16.mxu0 0
      %601 = vmatpush1.bf16.msra.mxu0 0
      %602 = vmatprep.subr.bf16.mxu0 0
      %603 = vmatpush1.bf16.msra.mxu0 0
      %604 = vmatprep.subr.bf16.mxu0 0
      %605 = vmatpush1.bf16.msra.mxu0 0
      %606 = vmatprep.subr.bf16.mxu0 0
      %607 = vmatpush1.bf16.msra.mxu0 0
      %608 = vmatprep.subr.bf16.mxu0 0
      %609 = vmatpush1.bf16.msra.mxu0 0
      %610 = vmatprep.subr.bf16.mxu0 0
      %611 = vmatpush1.bf16.msra.mxu0 0
      %612 = vmatprep.subr.bf16.mxu0 0
      %613 = vmatpush1.bf16.msra.mxu0 0
      %614 = vmatprep.subr.bf16.mxu0 0
      %615 = vmatpush1.bf16.msra.mxu0 0
      %616 = vmatprep.subr.bf16.mxu0 0
      %617 = vmatpush1.bf16.msra.mxu0 0
      %618 = vmatprep.subr.bf16.mxu0 0
      %619 = vmatpush1.bf16.msra.mxu0 0
      %620 = vmatprep.subr.bf16.mxu0 0
      %621 = vmatpush1.bf16.msra.mxu0 0
      %622 = vmatprep.mubr.bf16.mxu0 0
      %623 = vmatmul.mubr.bf16.gmra.mrb[0].mxu0 %v563
      %v624 = vpop.f32.mrb[0].mxu0
      %v625 = vadd.f32 0.0, %v624
      %v626 = vpop.f32.mrb[0].mxu0
      %v627 = vpop.f32.mrb[0].mxu0
      %v628 = vadd.f32 0.0, %v627
      %v629 = vpop.f32.mrb[0].mxu0
      %630 = vmatprep.mubr.bf16.mxu0 0
      %631 = vmatmul.mubr.bf16.gmra.mrb[0].mxu0 %v566
      %v632 = vpop.f32.mrb[0].mxu0
      %v633 = vadd.f32 0.0, %v632
      %v634 = vpop.f32.mrb[0].mxu0
      %v635 = vpop.f32.mrb[0].mxu0
      %v636 = vadd.f32 0.0, %v635
      %v637 = vpop.f32.mrb[0].mxu0
      %638 = vmatprep.mubr.bf16.mxu0 0
      %639 = vmatmul.mubr.bf16.gmra.mrb[0].mxu0 %v569
      %v640 = vpop.f32.mrb[0].mxu0
      %v641 = vadd.f32 0.0, %v640
      %v642 = vpop.f32.mrb[0].mxu0
      %v643 = vpop.f32.mrb[0].mxu0
      %v644 = vadd.f32 0.0, %v643
      %v645 = vpop.f32.mrb[0].mxu0
      %646 = vmatprep.mubr.bf16.mxu0 0
      %647 = vmatmul.mubr.bf16.gmra.mrb[0].mxu0 %v572
      %v648 = vpop.f32.mrb[0].mxu0
      %v649 = vadd.f32 0.0, %v648
      %v650 = vpop.f32.mrb[0].mxu0
      %v651 = vpop.f32.mrb[0].mxu0
      %v652 = vadd.f32 0.0, %v651
      %v653 = vpop.f32.mrb[0].mxu0
      %654 = vmatprep.mubr.bf16.mxu0 0
      %655 = vmatmul.mubr.bf16.gmra.mrb[0].mxu0 %v575
      %v656 = vpop.f32.mrb[0].mxu0
      %v657 = vadd.f32 0.0, %v656
      %v658 = vpop.f32.mrb[0].mxu0
      %v659 = vpop.f32.mrb[0].mxu0
      %v660 = vadd.f32 0.0, %v659
      %v661 = vpop.f32.mrb[0].mxu0
      %662 = vmatprep.mubr.bf16.mxu0 0
      %663 = vmatmul.mubr.bf16.gmra.mrb[0].mxu0 %v578
      %v664 = vpop.f32.mrb[0].mxu0
      %v665 = vadd.f32 0.0, %v664
      %v666 = vpop.f32.mrb[0].mxu0
      %v667 = vpop.f32.mrb[0].mxu0
      %v668 = vadd.f32 0.0, %v667
      %v669 = vpop.f32.mrb[0].mxu0
      %670 = vmatprep.mubr.bf16.mxu0 0
      %671 = vmatmul.mubr.bf16.gmra.mrb[0].mxu0 %v581
      %v672 = vpop.f32.mrb[0].mxu0
      %v673 = vadd.f32 0.0, %v672
      %v674 = vpop.f32.mrb[0].mxu0
      %v675 = vpop.f32.mrb[0].mxu0
      %v676 = vadd.f32 0.0, %v675
      %v677 = vpop.f32.mrb[0].mxu0
      %678 = vmatprep.mubr.bf16.mxu0 0
      %679 = vmatmul.mubr.bf16.gmra.mrb[0].mxu0 %v584
      %v680 = vpop.f32.mrb[0].mxu0
      %v681 = vadd.f32 0.0, %v680
      %v682 = vpop.f32.mrb[0].mxu0
      %v683 = vpop.f32.mrb[0].mxu0
      %v684 = vadd.f32 0.0, %v683
      %v685 = vpop.f32.mrb[0].mxu0
      %686 = vdwg.mxu0
      %v687 = vadd.f32 %v293, %v625
      %v688 = vadd.f32 %v293, %v628
      %v689 = vadd.f32 %v293, %v633
      %v690 = vadd.f32 %v293, %v636
      %v691 = vadd.f32 %v293, %v641
      %v692 = vadd.f32 %v293, %v644
      %v693 = vadd.f32 %v293, %v649
      %v694 = vadd.f32 %v293, %v652
      %v695 = vadd.f32 %v293, %v657
      %v696 = vadd.f32 %v293, %v660
      %v697 = vadd.f32 %v293, %v665
      %v698 = vadd.f32 %v293, %v668
      %v699 = vadd.f32 %v293, %v673
      %v700 = vadd.f32 %v293, %v676
      %v701 = vadd.f32 %v293, %v681
      %v702 = vadd.f32 %v293, %v684
      %703 = vset.pattern.permute.xlu0 1
      %704 = vperm.xlu0 %703, %v256
      %v705 = vpop.permute.xlu0 %704
      %706 = vset.pattern.permute.xlu0 1
      %707 = vperm.xlu0 %706, %v257
      %v708 = vpop.permute.xlu0 %707
      %709 = vset.pattern.permute.xlu0 1
      %710 = vperm.xlu0 %709, %v258
      %v711 = vpop.permute.xlu0 %710
      %712 = vset.pattern.permute.xlu0 1
      %713 = vperm.xlu0 %712, %v259
      %v714 = vpop.permute.xlu0 %713
      %715 = vset.pattern.permute.xlu0 1
      %716 = vperm.xlu0 %715, %v260
      %v717 = vpop.permute.xlu0 %716
      %718 = vset.pattern.permute.xlu0 1
      %719 = vperm.xlu0 %718, %v261
      %v720 = vpop.permute.xlu0 %719
      %721 = vset.pattern.permute.xlu0 1
      %722 = vperm.xlu0 %721, %v262
      %v723 = vpop.permute.xlu0 %722
      %724 = vset.pattern.permute.xlu0 1
      %725 = vperm.xlu0 %724, %v263
      %v726 = vpop.permute.xlu0 %725
      %727 = vset.pattern.permute.xlu0 1
      %728 = vperm.xlu0 %727, %v264
      %v729 = vpop.permute.xlu0 %728
      %730 = vset.pattern.permute.xlu0 1
      %731 = vperm.xlu0 %730, %v265
      %v732 = vpop.permute.xlu0 %731
      %733 = vset.pattern.permute.xlu0 1
      %734 = vperm.xlu0 %733, %v266
      %v735 = vpop.permute.xlu0 %734
      %736 = vset.pattern.permute.xlu0 1
      %737 = vperm.xlu0 %736, %v267
      %v738 = vpop.permute.xlu0 %737
      %739 = vset.pattern.permute.xlu0 1
      %740 = vperm.xlu0 %739, %v268
      %v741 = vpop.permute.xlu0 %740
      %742 = vset.pattern.permute.xlu0 1
      %743 = vperm.xlu0 %742, %v269
      %v744 = vpop.permute.xlu0 %743
      %745 = vset.pattern.permute.xlu0 1
      %746 = vperm.xlu0 %745, %v270
      %v747 = vpop.permute.xlu0 %746
      %748 = vset.pattern.permute.xlu0 1
      %749 = vperm.xlu0 %748, %v271
      %v750 = vpop.permute.xlu0 %749
      %vm751 = vcmp.eq.s32.totalorder %v705, %v296
      %vm752 = vcmp.eq.s32.totalorder %v708, %v296
      %vm753 = vcmp.eq.s32.totalorder %v711, %v296
      %vm754 = vcmp.eq.s32.totalorder %v714, %v296
      %vm755 = vcmp.eq.s32.totalorder %v717, %v296
      %vm756 = vcmp.eq.s32.totalorder %v720, %v296
      %vm757 = vcmp.eq.s32.totalorder %v723, %v296
      %vm758 = vcmp.eq.s32.totalorder %v726, %v296
      %vm759 = vcmp.eq.s32.totalorder %v729, %v296
      %vm760 = vcmp.eq.s32.totalorder %v732, %v296
      %vm761 = vcmp.eq.s32.totalorder %v735, %v296
      %vm762 = vcmp.eq.s32.totalorder %v738, %v296
      %vm763 = vcmp.eq.s32.totalorder %v741, %v296
      %vm764 = vcmp.eq.s32.totalorder %v744, %v296
      %vm765 = vcmp.eq.s32.totalorder %v747, %v296
      %vm766 = vcmp.eq.s32.totalorder %v750, %v296
      %v767 = vsel %vm751, 1, 0
      %v768 = vsel %vm752, 1, 0
      %v769 = vsel %vm753, 1, 0
      %v770 = vsel %vm754, 1, 0
      %v771 = vsel %vm755, 1, 0
      %v772 = vsel %vm756, 1, 0
      %v773 = vsel %vm757, 1, 0
      %v774 = vsel %vm758, 1, 0
      %v775 = vsel %vm759, 1, 0
      %v776 = vsel %vm760, 1, 0
      %v777 = vsel %vm761, 1, 0
      %v778 = vsel %vm762, 1, 0
      %v779 = vsel %vm763, 1, 0
      %v780 = vsel %vm764, 1, 0
      %v781 = vsel %vm765, 1, 0
      %v782 = vsel %vm766, 1, 0
      %v783 = vcvt.s32.f32 %v767
      %v784 = vcvt.s32.f32 %v768
      %v785 = vcvt.s32.f32 %v769
      %v786 = vcvt.s32.f32 %v770
      %v787 = vcvt.s32.f32 %v771
      %v788 = vcvt.s32.f32 %v772
      %v789 = vcvt.s32.f32 %v773
      %v790 = vcvt.s32.f32 %v774
      %v791 = vcvt.s32.f32 %v775
      %v792 = vcvt.s32.f32 %v776
      %v793 = vcvt.s32.f32 %v777
      %v794 = vcvt.s32.f32 %v778
      %v795 = vcvt.s32.f32 %v779
      %v796 = vcvt.s32.f32 %v780
      %v797 = vcvt.s32.f32 %v781
      %v798 = vcvt.s32.f32 %v782
      %v799 = vpack.c.bf16 %v784, %v783
      %v800 = vpack.c.bf16 %v786, %v785
      %v801 = vpack.c.bf16 %v788, %v787
      %v802 = vpack.c.bf16 %v790, %v789
      %v803 = vpack.c.bf16 %v792, %v791
      %v804 = vpack.c.bf16 %v794, %v793
      %v805 = vpack.c.bf16 %v796, %v795
      %v806 = vpack.c.bf16 %v798, %v797
      %807 = vmatprep.subr.bf16.mxu0 0
      %808 = vmatpush1.bf16.msra.mxu0 %v433
      %809 = vmatprep.subr.bf16.mxu0 0
      %810 = vmatpush1.bf16.msra.mxu0 %v434
      %811 = vmatprep.subr.bf16.mxu0 0
      %812 = vmatpush1.bf16.msra.mxu0 %v435
      %813 = vmatprep.subr.bf16.mxu0 0
      %814 = vmatpush1.bf16.msra.mxu0 %v436
      %815 = vmatprep.subr.bf16.mxu0 0
      %816 = vmatpush1.bf16.msra.mxu0 %v437
      %817 = vmatprep.subr.bf16.mxu0 0
      %818 = vmatpush1.bf16.msra.mxu0 %v438
      %819 = vmatprep.subr.bf16.mxu0 0
      %820 = vmatpush1.bf16.msra.mxu0 %v439
      %821 = vmatprep.subr.bf16.mxu0 0
      %822 = vmatpush1.bf16.msra.mxu0 %v440
      %823 = vmatprep.subr.bf16.mxu0 0
      %824 = vmatpush1.bf16.msra.mxu0 0
      %825 = vmatprep.subr.bf16.mxu0 0
      %826 = vmatpush1.bf16.msra.mxu0 0
      %827 = vmatprep.subr.bf16.mxu0 0
      %828 = vmatpush1.bf16.msra.mxu0 0
      %829 = vmatprep.subr.bf16.mxu0 0
      %830 = vmatpush1.bf16.msra.mxu0 0
      %831 = vmatprep.subr.bf16.mxu0 0
      %832 = vmatpush1.bf16.msra.mxu0 0
      %833 = vmatprep.subr.bf16.mxu0 0
      %834 = vmatpush1.bf16.msra.mxu0 0
      %835 = vmatprep.subr.bf16.mxu0 0
      %836 = vmatpush1.bf16.msra.mxu0 0
      %837 = vmatprep.subr.bf16.mxu0 0
      %838 = vmatpush1.bf16.msra.mxu0 0
      %839 = vmatprep.mubr.bf16.mxu0 0
      %840 = vmatmul.mubr.bf16.gmra.mrb[0].mxu0 %v799
      %v841 = vpop.f32.mrb[0].mxu0
      %v842 = vadd.f32 0.0, %v841
      %v843 = vpop.f32.mrb[0].mxu0
      %v844 = vpop.f32.mrb[0].mxu0
      %v845 = vadd.f32 0.0, %v844
      %v846 = vpop.f32.mrb[0].mxu0
      %847 = vmatprep.mubr.bf16.mxu0 0
      %848 = vmatmul.mubr.bf16.gmra.mrb[0].mxu0 %v800
      %v849 = vpop.f32.mrb[0].mxu0
      %v850 = vadd.f32 0.0, %v849
      %v851 = vpop.f32.mrb[0].mxu0
      %v852 = vpop.f32.mrb[0].mxu0
      %v853 = vadd.f32 0.0, %v852
      %v854 = vpop.f32.mrb[0].mxu0
      %855 = vmatprep.mubr.bf16.mxu0 0
      %856 = vmatmul.mubr.bf16.gmra.mrb[0].mxu0 %v801
      %v857 = vpop.f32.mrb[0].mxu0
      %v858 = vadd.f32 0.0, %v857
      %v859 = vpop.f32.mrb[0].mxu0
      %v860 = vpop.f32.mrb[0].mxu0
      %v861 = vadd.f32 0.0, %v860
      %v862 = vpop.f32.mrb[0].mxu0
      %863 = vmatprep.mubr.bf16.mxu0 0
      %864 = vmatmul.mubr.bf16.gmra.mrb[0].mxu0 %v802
      %v865 = vpop.f32.mrb[0].mxu0
      %v866 = vadd.f32 0.0, %v865
      %v867 = vpop.f32.mrb[0].mxu0
      %v868 = vpop.f32.mrb[0].mxu0
      %v869 = vadd.f32 0.0, %v868
      %v870 = vpop.f32.mrb[0].mxu0
      %871 = vmatprep.mubr.bf16.mxu0 0
      %872 = vmatmul.mubr.bf16.gmra.mrb[0].mxu0 %v803
      %v873 = vpop.f32.mrb[0].mxu0
      %v874 = vadd.f32 0.0, %v873
      %v875 = vpop.f32.mrb[0].mxu0
      %v876 = vpop.f32.mrb[0].mxu0
      %v877 = vadd.f32 0.0, %v876
      %v878 = vpop.f32.mrb[0].mxu0
      %879 = vmatprep.mubr.bf16.mxu0 0
      %880 = vmatmul.mubr.bf16.gmra.mrb[0].mxu0 %v804
      %v881 = vpop.f32.mrb[0].mxu0
      %v882 = vadd.f32 0.0, %v881
      %v883 = vpop.f32.mrb[0].mxu0
      %v884 = vpop.f32.mrb[0].mxu0
      %v885 = vadd.f32 0.0, %v884
      %v886 = vpop.f32.mrb[0].mxu0
      %887 = vmatprep.mubr.bf16.mxu0 0
      %888 = vmatmul.mubr.bf16.gmra.mrb[0].mxu0 %v805
      %v889 = vpop.f32.mrb[0].mxu0
      %v890 = vadd.f32 0.0, %v889
      %v891 = vpop.f32.mrb[0].mxu0
      %v892 = vpop.f32.mrb[0].mxu0
      %v893 = vadd.f32 0.0, %v892
      %v894 = vpop.f32.mrb[0].mxu0
      %895 = vmatprep.mubr.bf16.mxu0 0
      %896 = vmatmul.mubr.bf16.gmra.mrb[0].mxu0 %v806
      %v897 = vpop.f32.mrb[0].mxu0
      %v898 = vadd.f32 0.0, %v897
      %v899 = vpop.f32.mrb[0].mxu0
      %v900 = vpop.f32.mrb[0].mxu0
      %v901 = vadd.f32 0.0, %v900
      %v902 = vpop.f32.mrb[0].mxu0
      %903 = vdwg.mxu0
      %v904 = vpack.c.bf16 %v845, %v842
      %v905 = vpack.c.bf16 %v853, %v850
      %v906 = vpack.c.bf16 %v861, %v858
      %v907 = vpack.c.bf16 %v869, %v866
      %v908 = vpack.c.bf16 %v877, %v874
      %v909 = vpack.c.bf16 %v885, %v882
      %v910 = vpack.c.bf16 %v893, %v890
      %v911 = vpack.c.bf16 %v901, %v898
      %s912 = scalar_lea.vmem %s2, 8
      %v913 = vld [vmem:[%s912] sm:$0xf]
      %v914 = vld [vmem:[%s912 + $0x4] sm:$0x1]
      %v917 = vunpack.c.l.b16 %v913
      %v918 = vunpack.c.l.b16 %v914
      %v919 = vpack.c.b16 %v918, %v917
      %v921 = vsel %vm561, %v904, 0
      %v924 = vsel %vm561, %v905, 0
      %v927 = vsel %vm561, %v906, 0
      %v930 = vsel %vm561, %v907, 0
      %v933 = vsel %vm561, %v908, 0
      %v936 = vsel %vm561, %v909, 0
      %v939 = vsel %vm561, %v910, 0
      %v942 = vsel %vm561, %v911, 0
      %v945 = vsel %vm586, %v919, 0
      %947 = vmatprep.subr.bf16.mxu0 0
      %948 = vmatpush1.bf16.msra.mxu0 %v945
      %949 = vmatprep.subr.bf16.mxu0 0
      %950 = vmatpush1.bf16.msra.mxu0 0
      %951 = vmatprep.subr.bf16.mxu0 0
      %952 = vmatpush1.bf16.msra.mxu0 0
      %953 = vmatprep.subr.bf16.mxu0 0
      %954 = vmatpush1.bf16.msra.mxu0 0
      %955 = vmatprep.subr.bf16.mxu0 0
      %956 = vmatpush1.bf16.msra.mxu0 0
      %957 = vmatprep.subr.bf16.mxu0 0
      %958 = vmatpush1.bf16.msra.mxu0 0
      %959 = vmatprep.subr.bf16.mxu0 0
      %960 = vmatpush1.bf16.msra.mxu0 0
      %961 = vmatprep.subr.bf16.mxu0 0
      %962 = vmatpush1.bf16.msra.mxu0 0
      %963 = vmatprep.subr.bf16.mxu0 0
      %964 = vmatpush1.bf16.msra.mxu0 0
      %965 = vmatprep.subr.bf16.mxu0 0
      %966 = vmatpush1.bf16.msra.mxu0 0
      %967 = vmatprep.subr.bf16.mxu0 0
      %968 = vmatpush1.bf16.msra.mxu0 0
      %969 = vmatprep.subr.bf16.mxu0 0
      %970 = vmatpush1.bf16.msra.mxu0 0
      %971 = vmatprep.subr.bf16.mxu0 0
      %972 = vmatpush1.bf16.msra.mxu0 0
      %973 = vmatprep.subr.bf16.mxu0 0
      %974 = vmatpush1.bf16.msra.mxu0 0
      %975 = vmatprep.subr.bf16.mxu0 0
      %976 = vmatpush1.bf16.msra.mxu0 0
      %977 = vmatprep.subr.bf16.mxu0 0
      %978 = vmatpush1.bf16.msra.mxu0 0
      %979 = vmatprep.mubr.bf16.mxu0 0
      %980 = vmatmul.mubr.bf16.gmra.mrb[0].mxu0 %v921
      %v981 = vpop.f32.mrb[0].mxu0
      %v982 = vadd.f32 0.0, %v981
      %v983 = vpop.f32.mrb[0].mxu0
      %v984 = vpop.f32.mrb[0].mxu0
      %v985 = vadd.f32 0.0, %v984
      %v986 = vpop.f32.mrb[0].mxu0
      %987 = vmatprep.mubr.bf16.mxu0 0
      %988 = vmatmul.mubr.bf16.gmra.mrb[0].mxu0 %v924
      %v989 = vpop.f32.mrb[0].mxu0
      %v990 = vadd.f32 0.0, %v989
      %v991 = vpop.f32.mrb[0].mxu0
      %v992 = vpop.f32.mrb[0].mxu0
      %v993 = vadd.f32 0.0, %v992
      %v994 = vpop.f32.mrb[0].mxu0
      %995 = vmatprep.mubr.bf16.mxu0 0
      %996 = vmatmul.mubr.bf16.gmra.mrb[0].mxu0 %v927
      %v997 = vpop.f32.mrb[0].mxu0
      %v998 = vadd.f32 0.0, %v997
      %v999 = vpop.f32.mrb[0].mxu0
      %v1000 = vpop.f32.mrb[0].mxu0
      %v1001 = vadd.f32 0.0, %v1000
      %v1002 = vpop.f32.mrb[0].mxu0
      %1003 = vmatprep.mubr.bf16.mxu0 0
      %1004 = vmatmul.mubr.bf16.gmra.mrb[0].mxu0 %v930
      %v1005 = vpop.f32.mrb[0].mxu0
      %v1006 = vadd.f32 0.0, %v1005
      %v1007 = vpop.f32.mrb[0].mxu0
      %v1008 = vpop.f32.mrb[0].mxu0
      %v1009 = vadd.f32 0.0, %v1008
      %v1010 = vpop.f32.mrb[0].mxu0
      %1011 = vmatprep.mubr.bf16.mxu0 0
      %1012 = vmatmul.mubr.bf16.gmra.mrb[0].mxu0 %v933
      %v1013 = vpop.f32.mrb[0].mxu0
      %v1014 = vadd.f32 0.0, %v1013
      %v1015 = vpop.f32.mrb[0].mxu0
      %v1016 = vpop.f32.mrb[0].mxu0
      %v1017 = vadd.f32 0.0, %v1016
      %v1018 = vpop.f32.mrb[0].mxu0
      %1019 = vmatprep.mubr.bf16.mxu0 0
      %1020 = vmatmul.mubr.bf16.gmra.mrb[0].mxu0 %v936
      %v1021 = vpop.f32.mrb[0].mxu0
      %v1022 = vadd.f32 0.0, %v1021
      %v1023 = vpop.f32.mrb[0].mxu0
      %v1024 = vpop.f32.mrb[0].mxu0
      %v1025 = vadd.f32 0.0, %v1024
      %v1026 = vpop.f32.mrb[0].mxu0
      %1027 = vmatprep.mubr.bf16.mxu0 0
      %1028 = vmatmul.mubr.bf16.gmra.mrb[0].mxu0 %v939
      %v1029 = vpop.f32.mrb[0].mxu0
      %v1030 = vadd.f32 0.0, %v1029
      %v1031 = vpop.f32.mrb[0].mxu0
      %v1032 = vpop.f32.mrb[0].mxu0
      %v1033 = vadd.f32 0.0, %v1032
      %v1034 = vpop.f32.mrb[0].mxu0
      %1035 = vmatprep.mubr.bf16.mxu0 0
      %1036 = vmatmul.mubr.bf16.gmra.mrb[0].mxu0 %v942
      %v1037 = vpop.f32.mrb[0].mxu0
      %v1038 = vadd.f32 0.0, %v1037
      %v1039 = vpop.f32.mrb[0].mxu0
      %v1040 = vpop.f32.mrb[0].mxu0
      %v1041 = vadd.f32 0.0, %v1040
      %v1042 = vpop.f32.mrb[0].mxu0
      %1043 = vdwg.mxu0
      %v1044 = vadd.f32 %v687, %v982
      %v1045 = vadd.f32 %v688, %v985
      %v1046 = vadd.f32 %v689, %v990
      %v1047 = vadd.f32 %v690, %v993
      %v1048 = vadd.f32 %v691, %v998
      %v1049 = vadd.f32 %v692, %v1001
      %v1050 = vadd.f32 %v693, %v1006
      %v1051 = vadd.f32 %v694, %v1009
      %v1052 = vadd.f32 %v695, %v1014
      %v1053 = vadd.f32 %v696, %v1017
      %v1054 = vadd.f32 %v697, %v1022
      %v1055 = vadd.f32 %v698, %v1025
      %v1056 = vadd.f32 %v699, %v1030
      %v1057 = vadd.f32 %v700, %v1033
      %v1058 = vadd.f32 %v701, %v1038
      %v1059 = vadd.f32 %v702, %v1041
      %v1060 = vmax.f32 %v1044, 0.0
      %v1061 = vmax.f32 %v1045, 0.0
      %v1062 = vmax.f32 %v1046, 0.0
      %v1063 = vmax.f32 %v1047, 0.0
      %v1064 = vmax.f32 %v1048, 0.0
      %v1065 = vmax.f32 %v1049, 0.0
      %v1066 = vmax.f32 %v1050, 0.0
      %v1067 = vmax.f32 %v1051, 0.0
      %v1068 = vmax.f32 %v1052, 0.0
      %v1069 = vmax.f32 %v1053, 0.0
      %v1070 = vmax.f32 %v1054, 0.0
      %v1071 = vmax.f32 %v1055, 0.0
      %v1072 = vmax.f32 %v1056, 0.0
      %v1073 = vmax.f32 %v1057, 0.0
      %v1074 = vmax.f32 %v1058, 0.0
      %v1075 = vmax.f32 %v1059, 0.0
      %v1076 = vpack.c.bf16 %v1061, %v1060
      %v1077 = vpack.c.bf16 %v1063, %v1062
      %v1078 = vpack.c.bf16 %v1065, %v1064
      %v1079 = vpack.c.bf16 %v1067, %v1066
      %v1080 = vpack.c.bf16 %v1069, %v1068
      %v1081 = vpack.c.bf16 %v1071, %v1070
      %v1082 = vpack.c.bf16 %v1073, %v1072
      %v1083 = vpack.c.bf16 %v1075, %v1074
      %v1084 = vld [vmem:[%s4] sm:$0xf]
      %v1085 = vld [vmem:[%s4 + $0x4] sm:$0xf]
      %v1086 = vld [vmem:[%s4 + $0x8] sm:$0xf]
      %v1087 = vld [vmem:[%s4 + $0xc] sm:$0xf]
      %v1088 = vld [vmem:[%s4 + $0x10] sm:$0xf]
      %v1089 = vld [vmem:[%s4 + $0x14] sm:$0xf]
      %v1090 = vld [vmem:[%s4 + $0x18] sm:$0xf]
      %v1091 = vld [vmem:[%s4 + $0x1c] sm:$0xf]
      %v1092 = vld [vmem:[%s4 + $0x20] sm:$0xf]
      %v1093 = vld [vmem:[%s4 + $0x24] sm:$0xf]
      %v1094 = vld [vmem:[%s4 + $0x28] sm:$0xf]
      %v1095 = vld [vmem:[%s4 + $0x2c] sm:$0xf]
      %v1096 = vld [vmem:[%s4 + $0x30] sm:$0xf]
      %v1097 = vld [vmem:[%s4 + $0x34] sm:$0xf]
      %v1098 = vld [vmem:[%s4 + $0x38] sm:$0xf]
      %v1099 = vld [vmem:[%s4 + $0x3c] sm:$0xf]
      %v1100 = vld [vmem:[%s5] sm:$0x1]
      %v1102 = vlaneseq
      %v1103 = vshrl.u32 %v1102, 7
      %v1104 = vsub.s32 0, %v1103
      %v1105 = vrot.slane %v1100, %v1104
      %v1123 = vunpack.c.l.b16 %v1084
      %v1124 = vunpack.c.l.b16 %v1085
      %v1125 = vunpack.c.l.b16 %v1086
      %v1126 = vunpack.c.l.b16 %v1087
      %v1127 = vunpack.c.l.b16 %v1088
      %v1128 = vunpack.c.l.b16 %v1089
      %v1129 = vunpack.c.l.b16 %v1090
      %v1130 = vunpack.c.l.b16 %v1091
      %v1131 = vunpack.c.l.b16 %v1092
      %v1132 = vunpack.c.l.b16 %v1093
      %v1133 = vunpack.c.l.b16 %v1094
      %v1134 = vunpack.c.l.b16 %v1095
      %v1135 = vunpack.c.l.b16 %v1096
      %v1136 = vunpack.c.l.b16 %v1097
      %v1137 = vunpack.c.l.b16 %v1098
      %v1138 = vunpack.c.l.b16 %v1099
      %v1139 = vpack.c.b16 %v1124, %v1123
      %v1140 = vpack.c.b16 %v1126, %v1125
      %v1141 = vpack.c.b16 %v1128, %v1127
      %v1142 = vpack.c.b16 %v1130, %v1129
      %v1143 = vpack.c.b16 %v1132, %v1131
      %v1144 = vpack.c.b16 %v1134, %v1133
      %v1145 = vpack.c.b16 %v1136, %v1135
      %v1146 = vpack.c.b16 %v1138, %v1137
      %1155 = vmatprep.subr.bf16.mxu0 0
      %1156 = vmatpush1.bf16.msra.mxu0 %v1139
      %1157 = vmatprep.subr.bf16.mxu0 0
      %1158 = vmatpush1.bf16.msra.mxu0 %v1140
      %1159 = vmatprep.subr.bf16.mxu0 0
      %1160 = vmatpush1.bf16.msra.mxu0 %v1141
      %1161 = vmatprep.subr.bf16.mxu0 0
      %1162 = vmatpush1.bf16.msra.mxu0 %v1142
      %1163 = vmatprep.subr.bf16.mxu0 0
      %1164 = vmatpush1.bf16.msra.mxu0 %v1143
      %1165 = vmatprep.subr.bf16.mxu0 0
      %1166 = vmatpush1.bf16.msra.mxu0 %v1144
      %1167 = vmatprep.subr.bf16.mxu0 0
      %1168 = vmatpush1.bf16.msra.mxu0 %v1145
      %1169 = vmatprep.subr.bf16.mxu0 0
      %1170 = vmatpush1.bf16.msra.mxu0 %v1146
      %1171 = vmatprep.subr.bf16.mxu0 0
      %1172 = vmatpush1.bf16.msra.mxu0 0
      %1173 = vmatprep.subr.bf16.mxu0 0
      %1174 = vmatpush1.bf16.msra.mxu0 0
      %1175 = vmatprep.subr.bf16.mxu0 0
      %1176 = vmatpush1.bf16.msra.mxu0 0
      %1177 = vmatprep.subr.bf16.mxu0 0
      %1178 = vmatpush1.bf16.msra.mxu0 0
      %1179 = vmatprep.subr.bf16.mxu0 0
      %1180 = vmatpush1.bf16.msra.mxu0 0
      %1181 = vmatprep.subr.bf16.mxu0 0
      %1182 = vmatpush1.bf16.msra.mxu0 0
      %1183 = vmatprep.subr.bf16.mxu0 0
      %1184 = vmatpush1.bf16.msra.mxu0 0
      %1185 = vmatprep.subr.bf16.mxu0 0
      %1186 = vmatpush1.bf16.msra.mxu0 0
      %1187 = vmatprep.mubr.bf16.mxu0 0
      %1188 = vmatmul.mubr.bf16.gmra.mrb[0].mxu0 %v1076
      %v1189 = vpop.f32.mrb[0].mxu0
      %v1190 = vadd.f32 %v1105, %v1189
      %v1191 = vpop.f32.mrb[0].mxu0
      %v1192 = vpop.f32.mrb[0].mxu0
      %v1193 = vadd.f32 %v1105, %v1192
      %v1194 = vpop.f32.mrb[0].mxu0
      %1195 = vmatprep.mubr.bf16.mxu0 0
      %1196 = vmatmul.mubr.bf16.gmra.mrb[0].mxu0 %v1077
      %v1197 = vpop.f32.mrb[0].mxu0
      %v1198 = vadd.f32 %v1105, %v1197
      %v1199 = vpop.f32.mrb[0].mxu0
      %v1200 = vpop.f32.mrb[0].mxu0
      %v1201 = vadd.f32 %v1105, %v1200
      %v1202 = vpop.f32.mrb[0].mxu0
      %1203 = vmatprep.mubr.bf16.mxu0 0
      %1204 = vmatmul.mubr.bf16.gmra.mrb[0].mxu0 %v1078
      %v1205 = vpop.f32.mrb[0].mxu0
      %v1206 = vadd.f32 %v1105, %v1205
      %v1207 = vpop.f32.mrb[0].mxu0
      %v1208 = vpop.f32.mrb[0].mxu0
      %v1209 = vadd.f32 %v1105, %v1208
      %v1210 = vpop.f32.mrb[0].mxu0
      %1211 = vmatprep.mubr.bf16.mxu0 0
      %1212 = vmatmul.mubr.bf16.gmra.mrb[0].mxu0 %v1079
      %v1213 = vpop.f32.mrb[0].mxu0
      %v1214 = vadd.f32 %v1105, %v1213
      %v1215 = vpop.f32.mrb[0].mxu0
      %v1216 = vpop.f32.mrb[0].mxu0
      %v1217 = vadd.f32 %v1105, %v1216
      %v1218 = vpop.f32.mrb[0].mxu0
      %1219 = vmatprep.mubr.bf16.mxu0 0
      %1220 = vmatmul.mubr.bf16.gmra.mrb[0].mxu0 %v1080
      %v1221 = vpop.f32.mrb[0].mxu0
      %v1222 = vadd.f32 %v1105, %v1221
      %v1223 = vpop.f32.mrb[0].mxu0
      %v1224 = vpop.f32.mrb[0].mxu0
      %v1225 = vadd.f32 %v1105, %v1224
      %v1226 = vpop.f32.mrb[0].mxu0
      %1227 = vmatprep.mubr.bf16.mxu0 0
      %1228 = vmatmul.mubr.bf16.gmra.mrb[0].mxu0 %v1081
      %v1229 = vpop.f32.mrb[0].mxu0
      %v1230 = vadd.f32 %v1105, %v1229
      %v1231 = vpop.f32.mrb[0].mxu0
      %v1232 = vpop.f32.mrb[0].mxu0
      %v1233 = vadd.f32 %v1105, %v1232
      %v1234 = vpop.f32.mrb[0].mxu0
      %1235 = vmatprep.mubr.bf16.mxu0 0
      %1236 = vmatmul.mubr.bf16.gmra.mrb[0].mxu0 %v1082
      %v1237 = vpop.f32.mrb[0].mxu0
      %v1238 = vadd.f32 %v1105, %v1237
      %v1239 = vpop.f32.mrb[0].mxu0
      %v1240 = vpop.f32.mrb[0].mxu0
      %v1241 = vadd.f32 %v1105, %v1240
      %v1242 = vpop.f32.mrb[0].mxu0
      %1243 = vmatprep.mubr.bf16.mxu0 0
      %1244 = vmatmul.mubr.bf16.gmra.mrb[0].mxu0 %v1083
      %v1245 = vpop.f32.mrb[0].mxu0
      %v1246 = vadd.f32 %v1105, %v1245
      %v1247 = vpop.f32.mrb[0].mxu0
      %v1248 = vpop.f32.mrb[0].mxu0
      %v1249 = vadd.f32 %v1105, %v1248
      %v1250 = vpop.f32.mrb[0].mxu0
      %1251 = vdwg.mxu0
      %1252 = vmax.xlane.f32.xlu0 %v1190
      %v1253 = vpop.xlane.xlu0 %1252
      %1254 = vmax.xlane.f32.xlu0 %v1193
      %v1255 = vpop.xlane.xlu0 %1254
      %1256 = vmax.xlane.f32.xlu0 %v1198
      %v1257 = vpop.xlane.xlu0 %1256
      %1258 = vmax.xlane.f32.xlu0 %v1201
      %v1259 = vpop.xlane.xlu0 %1258
      %1260 = vmax.xlane.f32.xlu0 %v1206
      %v1261 = vpop.xlane.xlu0 %1260
      %1262 = vmax.xlane.f32.xlu0 %v1209
      %v1263 = vpop.xlane.xlu0 %1262
      %1264 = vmax.xlane.f32.xlu0 %v1214
      %v1265 = vpop.xlane.xlu0 %1264
      %1266 = vmax.xlane.f32.xlu0 %v1217
      %v1267 = vpop.xlane.xlu0 %1266
      %1268 = vmax.xlane.f32.xlu0 %v1222
      %v1269 = vpop.xlane.xlu0 %1268
      %1270 = vmax.xlane.f32.xlu0 %v1225
      %v1271 = vpop.xlane.xlu0 %1270
      %1272 = vmax.xlane.f32.xlu0 %v1230
      %v1273 = vpop.xlane.xlu0 %1272
      %1274 = vmax.xlane.f32.xlu0 %v1233
      %v1275 = vpop.xlane.xlu0 %1274
      %1276 = vmax.xlane.f32.xlu0 %v1238
      %v1277 = vpop.xlane.xlu0 %1276
      %1278 = vmax.xlane.f32.xlu0 %v1241
      %v1279 = vpop.xlane.xlu0 %1278
      %1280 = vmax.xlane.f32.xlu0 %v1246
      %v1281 = vpop.xlane.xlu0 %1280
      %1282 = vmax.xlane.f32.xlu0 %v1249
      %v1283 = vpop.xlane.xlu0 %1282
      %v1284 = vsub.f32 %v1190, %v1253
      %v1285 = vsub.f32 %v1193, %v1255
      %v1286 = vsub.f32 %v1198, %v1257
      %v1287 = vsub.f32 %v1201, %v1259
      %v1288 = vsub.f32 %v1206, %v1261
      %v1289 = vsub.f32 %v1209, %v1263
      %v1290 = vsub.f32 %v1214, %v1265
      %v1291 = vsub.f32 %v1217, %v1267
      %v1292 = vsub.f32 %v1222, %v1269
      %v1293 = vsub.f32 %v1225, %v1271
      %v1294 = vsub.f32 %v1230, %v1273
      %v1295 = vsub.f32 %v1233, %v1275
      %v1296 = vsub.f32 %v1238, %v1277
      %v1297 = vsub.f32 %v1241, %v1279
      %v1298 = vsub.f32 %v1246, %v1281
      %v1299 = vsub.f32 %v1249, %v1283
      %v1300 = vmul.f32 %v1284, 1.442695
      %v1301 = vpow.pop %v1300
      %v1302 = vmul.f32 %v1285, 1.442695
      %v1303 = vpow.pop %v1302
      %v1304 = vmul.f32 %v1286, 1.442695
      %v1305 = vpow.pop %v1304
      %v1306 = vmul.f32 %v1287, 1.442695
      %v1307 = vpow.pop %v1306
      %v1308 = vmul.f32 %v1288, 1.442695
      %v1309 = vpow.pop %v1308
      %v1310 = vmul.f32 %v1289, 1.442695
      %v1311 = vpow.pop %v1310
      %v1312 = vmul.f32 %v1290, 1.442695
      %v1313 = vpow.pop %v1312
      %v1314 = vmul.f32 %v1291, 1.442695
      %v1315 = vpow.pop %v1314
      %v1316 = vmul.f32 %v1292, 1.442695
      %v1317 = vpow.pop %v1316
      %v1318 = vmul.f32 %v1293, 1.442695
      %v1319 = vpow.pop %v1318
      %v1320 = vmul.f32 %v1294, 1.442695
      %v1321 = vpow.pop %v1320
      %v1322 = vmul.f32 %v1295, 1.442695
      %v1323 = vpow.pop %v1322
      %v1324 = vmul.f32 %v1296, 1.442695
      %v1325 = vpow.pop %v1324
      %v1326 = vmul.f32 %v1297, 1.442695
      %v1327 = vpow.pop %v1326
      %v1328 = vmul.f32 %v1298, 1.442695
      %v1329 = vpow.pop %v1328
      %v1330 = vmul.f32 %v1299, 1.442695
      %v1331 = vpow.pop %v1330
      %1332 = vadd.xlane.f32.xlu0 %v1301
      %v1333 = vpop.xlane.xlu0 %1332
      %1334 = vadd.xlane.f32.xlu0 %v1303
      %v1335 = vpop.xlane.xlu0 %1334
      %1336 = vadd.xlane.f32.xlu0 %v1305
      %v1337 = vpop.xlane.xlu0 %1336
      %1338 = vadd.xlane.f32.xlu0 %v1307
      %v1339 = vpop.xlane.xlu0 %1338
      %1340 = vadd.xlane.f32.xlu0 %v1309
      %v1341 = vpop.xlane.xlu0 %1340
      %1342 = vadd.xlane.f32.xlu0 %v1311
      %v1343 = vpop.xlane.xlu0 %1342
      %1344 = vadd.xlane.f32.xlu0 %v1313
      %v1345 = vpop.xlane.xlu0 %1344
      %1346 = vadd.xlane.f32.xlu0 %v1315
      %v1347 = vpop.xlane.xlu0 %1346
      %1348 = vadd.xlane.f32.xlu0 %v1317
      %v1349 = vpop.xlane.xlu0 %1348
      %1350 = vadd.xlane.f32.xlu0 %v1319
      %v1351 = vpop.xlane.xlu0 %1350
      %1352 = vadd.xlane.f32.xlu0 %v1321
      %v1353 = vpop.xlane.xlu0 %1352
      %1354 = vadd.xlane.f32.xlu0 %v1323
      %v1355 = vpop.xlane.xlu0 %1354
      %1356 = vadd.xlane.f32.xlu0 %v1325
      %v1357 = vpop.xlane.xlu0 %1356
      %1358 = vadd.xlane.f32.xlu0 %v1327
      %v1359 = vpop.xlane.xlu0 %1358
      %1360 = vadd.xlane.f32.xlu0 %v1329
      %v1361 = vpop.xlane.xlu0 %1360
      %1362 = vadd.xlane.f32.xlu0 %v1331
      %v1363 = vpop.xlane.xlu0 %1362
      %v1364 = vlog2.pop %v1333
      %v1365 = vmul.f32 %v1364, 0.6931472
      %v1366 = vlog2.pop %v1335
      %v1367 = vmul.f32 %v1366, 0.6931472
      %v1368 = vlog2.pop %v1337
      %v1369 = vmul.f32 %v1368, 0.6931472
      %v1370 = vlog2.pop %v1339
      %v1371 = vmul.f32 %v1370, 0.6931472
      %v1372 = vlog2.pop %v1341
      %v1373 = vmul.f32 %v1372, 0.6931472
      %v1374 = vlog2.pop %v1343
      %v1375 = vmul.f32 %v1374, 0.6931472
      %v1376 = vlog2.pop %v1345
      %v1377 = vmul.f32 %v1376, 0.6931472
      %v1378 = vlog2.pop %v1347
      %v1379 = vmul.f32 %v1378, 0.6931472
      %v1380 = vlog2.pop %v1349
      %v1381 = vmul.f32 %v1380, 0.6931472
      %v1382 = vlog2.pop %v1351
      %v1383 = vmul.f32 %v1382, 0.6931472
      %v1384 = vlog2.pop %v1353
      %v1385 = vmul.f32 %v1384, 0.6931472
      %v1386 = vlog2.pop %v1355
      %v1387 = vmul.f32 %v1386, 0.6931472
      %v1388 = vlog2.pop %v1357
      %v1389 = vmul.f32 %v1388, 0.6931472
      %v1390 = vlog2.pop %v1359
      %v1391 = vmul.f32 %v1390, 0.6931472
      %v1392 = vlog2.pop %v1361
      %v1393 = vmul.f32 %v1392, 0.6931472
      %v1394 = vlog2.pop %v1363
      %v1395 = vmul.f32 %v1394, 0.6931472
      %v1396 = vsub.f32 %v1284, %v1365
      %v1397 = vsub.f32 %v1285, %v1367
      %v1398 = vsub.f32 %v1286, %v1369
      %v1399 = vsub.f32 %v1287, %v1371
      %v1400 = vsub.f32 %v1288, %v1373
      %v1401 = vsub.f32 %v1289, %v1375
      %v1402 = vsub.f32 %v1290, %v1377
      %v1403 = vsub.f32 %v1291, %v1379
      %v1404 = vsub.f32 %v1292, %v1381
      %v1405 = vsub.f32 %v1293, %v1383
      %v1406 = vsub.f32 %v1294, %v1385
      %v1407 = vsub.f32 %v1295, %v1387
      %v1408 = vsub.f32 %v1296, %v1389
      %v1409 = vsub.f32 %v1297, %v1391
      %v1410 = vsub.f32 %v1298, %v1393
      %v1411 = vsub.f32 %v1299, %v1395
      %1412 = vst [vmem:[%s253] sm:$0xff] %v1396
      %1413 = vst [vmem:[%s253 + $0x8] sm:$0xff] %v1397
      %1414 = vst [vmem:[%s253 + $0x10] sm:$0xff] %v1398
      %1415 = vst [vmem:[%s253 + $0x18] sm:$0xff] %v1399
      %1416 = vst [vmem:[%s253 + $0x20] sm:$0xff] %v1400
      %1417 = vst [vmem:[%s253 + $0x28] sm:$0xff] %v1401
      %1418 = vst [vmem:[%s253 + $0x30] sm:$0xff] %v1402
      %1419 = vst [vmem:[%s253 + $0x38] sm:$0xff] %v1403
      %1420 = vst [vmem:[%s253 + $0x40] sm:$0xff] %v1404
      %1421 = vst [vmem:[%s253 + $0x48] sm:$0xff] %v1405
      %1422 = vst [vmem:[%s253 + $0x50] sm:$0xff] %v1406
      %1423 = vst [vmem:[%s253 + $0x58] sm:$0xff] %v1407
      %1424 = vst [vmem:[%s253 + $0x60] sm:$0xff] %v1408
      %1425 = vst [vmem:[%s253 + $0x68] sm:$0xff] %v1409
      %1426 = vst [vmem:[%s253 + $0x70] sm:$0xff] %v1410
      %1427 = vst [vmem:[%s253 + $0x78] sm:$0xff] %v1411
      %s1428 = smul.u32 16, %s17
      %p1429 = scmp.lt.s32.totalorder %s1428, 31
      %s1430 = scalar_select %p1429, %s1428, 31
      %s1431 = smul.addr %s1430, 8
      %s1432 = scalar_lea.vmem %s6, %s1431
      // Predicated region
      $region45: #{ngram_forward_batched.1} parent=43 // pred_check
        %p1433 = pneg %p166
      $region46: #{ngram_forward_batched.1} parent=43 // pred_check_branch
        %1435 = sbr.rel (%p1433) target = $region48
      $region47: #{ngram_forward_batched.1} parent=43 // pred_region
        %s1436 = smul.u32 16, %s17
      $region48: #{ngram_forward_batched.1} parent=43 // pred_fallthru
        _
    $region44: #{ngram_forward_batched.1} parent=5 // pred_fallthru
      _
    %p1437 = scmp.le.s32.totalorder 2, %s12
    // Predicated region
    $region49: #{ngram_forward_batched.1} parent=5 // pred_check
      %p1438 = pneg %p1437
    $region50: #{ngram_forward_batched.1} parent=5 // pred_check_branch
      %1440 = sbr.rel (%p1438) target = $region52
    $region51: #{ngram_forward_batched.1} parent=5 // pred_region
      %s1441 = ssub.s32 %s12, 2
      // Predicated region
      $region53: #{ngram_forward_batched.1} parent=51 // pred_check
        %p1442 = pneg %p172
      $region54: #{ngram_forward_batched.1} parent=51 // pred_check_branch
        %1444 = sbr.rel (%p1442) target = $region56
      $region55: #{ngram_forward_batched.1} parent=51 // pred_region
        %s1445 = smul.u32 16, %s18
        %p1446 = scmp.lt.s32.totalorder %s1445, 31
        %s1447 = scalar_select %p1446, %s1445, 31
        %s1448 = smul.addr %s1447, 8
        %s1449 = scalar_lea.vmem %s6, %s1448
      $region56: #{ngram_forward_batched.1} parent=51 // pred_fallthru
        _
    $region52: #{ngram_forward_batched.1} parent=5 // pred_fallthru
      _
  $region6: #{ngram_forward_batched.1} parent=0 // loop_footer
    %s16 = sadd.s32 1, %s12
  $region7: #{ngram_forward_batched.1} parent=0 // loop_footer_branch
    %11 = sbr.rel target = $region3
  $region8: #{ngram_forward_batched.1} parent=0 // loop_exit
    _

</llo_original>
